<compile_context>
chip_gen: v6e
topology: v6e:2x2x1
jax: 0.10.0
libtpu: 0.0.40
codegen_flags: <defaults>
</compile_context>

<pallas_src>
import jax
import jax.numpy as jnp
from jax.experimental import pallas as pl
from jax.experimental.pallas import tpu as pltpu


def _round_up(n, m):
    return ((n + m - 1) // m) * m


def _cdiv(a, b):
    return -(-a // b)


def _block_diag(w, k):
    """(S, H) -> (k*S, k*H): block-diagonal with k copies of w on the diagonal."""
    s, h = w.shape
    eye = jnp.eye(k, dtype=w.dtype)
    return (eye[:, None, :, None] * w[None, :, None, :]).reshape(k * s, k * h)


def policy_kernel(x_ref, w1_ref, b1_ref, w2_ref, b2_ref, o_ref):
    # Two MXU matmuls + VPU bias-add / ReLU, fully fused in VMEM.
    # Accumulation is f32 regardless of the streaming dtype (f32 or bf16).
    x = x_ref[...]                                          # (tr, k*S)
    h = jnp.dot(x, w1_ref[...],
                preferred_element_type=jnp.float32)         # (tr, k*H) f32
    h = jnp.maximum(h + b1_ref[...], 0.0)                   # bias + ReLU in f32
    h = h.astype(w2_ref.dtype)                              # no-op when f32
    y = jnp.dot(h, w2_ref[...],
                preferred_element_type=jnp.float32)         # (tr, k*A) f32
    o_ref[...] = (y + b2_ref[...]).astype(o_ref.dtype)


def policy_forward(x, w1, b1, w2, b2, *, pack=16, tile_rows=512,
                   use_bf16_inputs=True):
    """Fused forward pass of PolicyNetwork.

    x:  (B, S) float32
    w1: (S, H) float32   b1: (1, H) float32     (transposed vs. PyTorch nn.Linear)
    w2: (H, A) float32   b2: (1, A) float32
    Returns (B, A) float32 == relu(x @ w1 + b1) @ w2 + b2.

    pack: batch rows packed per lane-row (16 -> K=256, out lanes=128 for
          v6e/v7x; 8 -> K=128 to exactly fill the v5e MXU).
    """
    B, S = x.shape
    H = w1.shape[1]
    A = w2.shape[1]
    k = int(pack)

    # Sublane granularity of the streamed blocks (bf16 min tile is (16,128)).
    sub = 16 if use_bf16_inputs else 8

    # Number of packed rows needed and the packed-row tile.
    r0 = max(_cdiv(B, k), 1)
    tr = min(_round_up(tile_rows, sub), _round_up(r0, sub))
    if r0 > sub:
        # v7x megacore: keep >=2 grid steps whenever the batch permits so the
        # "parallel" batch axis can shard across both TensorCores.
        tr = min(tr, _round_up(_cdiv(r0, 2), sub))
    tr = max(sub, tr)
    rp = _round_up(r0, tr)          # padded packed rows
    bp = rp * k                     # padded batch
    if bp != B:
        x = jnp.pad(x, ((0, bp - B), (0, 0)))

    # Lane-dense packing: pure row-major reshapes (no transpose, no copy).
    xp = x.reshape(rp, k * S)                       # (rows, k*S)
    w1_bd = _block_diag(w1, k)                      # (k*S, k*H)
    w2_bd = _block_diag(w2, k)                      # (k*H, k*A)
    b1_t = jnp.tile(b1.reshape(1, H), (1, k)).astype(jnp.float32)   # (1, k*H)
    b2_t = jnp.tile(b2.reshape(1, A), (1, k)).astype(jnp.float32)   # (1, k*A)

    if use_bf16_inputs:
        # Halve the dominant HBM stream (x) and the weight footprint; the
        # kernel still accumulates and applies bias/ReLU in f32.
        xp = xp.astype(jnp.bfloat16)
        w1_bd = w1_bd.astype(jnp.bfloat16)
        w2_bd = w2_bd.astype(jnp.bfloat16)

    KS, KH, KA = k * S, k * H, k * A
    grid = (rp // tr,)

    bytes_accessed = (
        xp.size * xp.dtype.itemsize
        + w1_bd.size * w1_bd.dtype.itemsize
        + w2_bd.size * w2_bd.dtype.itemsize
        + b1_t.size * 4 + b2_t.size * 4
        + rp * KA * 4)                                # f32 output
    flops = 2 * rp * (KS * KH + KH * KA)              # MXU work actually issued

    out = pl.pallas_call(
        policy_kernel,
        out_shape=jax.ShapeDtypeStruct((rp, KA), jnp.float32),
        grid_spec=pl.GridSpec(
            grid=grid,
            in_specs=[
                pl.BlockSpec((tr, KS), lambda i: (i, 0)),   # x tile (streamed, lane dense)
                pl.BlockSpec((KS, KH), lambda i: (0, 0)),   # W1 block-diag (resident)
                pl.BlockSpec((1, KH), lambda i: (0, 0)),    # b1 (resident)
                pl.BlockSpec((KH, KA), lambda i: (0, 0)),   # W2 block-diag (resident)
                pl.BlockSpec((1, KA), lambda i: (0, 0)),    # b2 (resident)
            ],
            out_specs=pl.BlockSpec((tr, KA), lambda i: (i, 0)),  # lane-dense output
        ),
        compiler_params=pltpu.CompilerParams(
            # Batch axis shards across TensorCores on v7x megacore.
            dimension_semantics=("parallel",),
        ),
        cost_estimate=pl.CostEstimate(
            flops=flops, transcendentals=0, bytes_accessed=bytes_accessed),
    )(xp, w1_bd, b1_t, w2_bd, b2_t)

    # Unpack: row-major reshape back to (padded batch, A), then drop padding.
    return out.reshape(bp, A)[:B]


def init_params(key, state_dim, hidden, action_dim):
    # Deterministic synthetic init (matches nn.Linear uniform(+/-1/sqrt(fan_in)) bounds).
    k1, k2, k3, k4 = jax.random.split(key, 4)
    lim1 = 1.0 / jnp.sqrt(state_dim)
    lim2 = 1.0 / jnp.sqrt(hidden)
    w1 = jax.random.uniform(k1, (state_dim, hidden), jnp.float32, -lim1, lim1)
    b1 = jax.random.uniform(k2, (1, hidden), jnp.float32, -lim1, lim1)
    w2 = jax.random.uniform(k3, (hidden, action_dim), jnp.float32, -lim2, lim2)
    b2 = jax.random.uniform(k4, (1, action_dim), jnp.float32, -lim2, lim2)
    return w1, b1, w2, b2


def _reference(x, w1, b1, w2, b2):
    hp = jax.lax.Precision.HIGHEST
    h = jnp.maximum(jnp.dot(x, w1, precision=hp) + b1, 0.0)
    return jnp.dot(h, w2, precision=hp) + b2


if __name__ == "__main__":
    STATE_DIM = 16
    HIDDEN = 64
    ACTION_DIM = 8
    BATCH = 8

    key = jax.random.PRNGKey(0)
    kx, kp = jax.random.split(key)
    x = jax.random.normal(kx, (BATCH, STATE_DIM), jnp.float32)
    w1, b1, w2, b2 = init_params(kp, STATE_DIM, HIDDEN, ACTION_DIM)

    ref = _reference(x, w1, b1, w2, b2)

    # Default path: bf16 streaming, f32 accumulation, lane-dense packing.
    out = jax.block_until_ready(policy_forward(x, w1, b1, w2, b2))
    assert out.shape == (BATCH, ACTION_DIM)
    assert jnp.allclose(out, ref, atol=3e-2, rtol=3e-2), "bf16-path mismatch vs reference"

    # f32 streaming path (closest to PyTorch f32 numerics).
    out_f32 = jax.block_until_ready(
        policy_forward(x, w1, b1, w2, b2, use_bf16_inputs=False))
    assert jnp.allclose(out_f32, ref, atol=3e-2, rtol=3e-2), "f32-path mismatch vs reference"

    # Non-multiple batch exercises padding + packing.
    x_odd = x[:5]
    out_odd = jax.block_until_ready(policy_forward(x_odd, w1, b1, w2, b2))
    ref_odd = _reference(x_odd, w1, b1, w2, b2)
    assert out_odd.shape == (5, ACTION_DIM)
    assert jnp.allclose(out_odd, ref_odd, atol=3e-2, rtol=3e-2), "padded-batch mismatch"

    # Moderate batch exercises a multi-step grid (>=2 steps -> v7x megacore path).
    x_big = jax.random.normal(jax.random.PRNGKey(1), (600, STATE_DIM), jnp.float32)
    out_big = jax.block_until_ready(policy_forward(x_big, w1, b1, w2, b2))
    ref_big = _reference(x_big, w1, b1, w2, b2)
    assert out_big.shape == (600, ACTION_DIM)
    assert jnp.allclose(out_big, ref_big, atol=3e-2, rtol=3e-2), "multi-step grid mismatch"

    print("KERNEL_OK")
</pallas_src>

<mosaic_0001>
module attributes {stable_mosaic.version = 11 : i64} {
  func.func @policy_kernel(%arg0: i32, %arg1: memref<16x256xbf16, #tpu.memory_space<vmem>>, %arg2: memref<256x1024xbf16, #tpu.memory_space<vmem>>, %arg3: memref<1x1024xf32, #tpu.memory_space<vmem>>, %arg4: memref<1024x128xbf16, #tpu.memory_space<vmem>>, %arg5: memref<1x128xf32, #tpu.memory_space<vmem>>, %arg6: memref<16x128xf32, #tpu.memory_space<vmem>>) attributes {dimension_semantics = [#tpu.dimension_semantics<parallel>], iteration_bounds = array<i64: 1>, scalar_prefetch = 0 : i64, scratch_operands = 0 : i64, tpu.core_type = #tpu.core_type<tc>, window_params = [{transform_indices = @transform_0, window_bounds = array<i64: 16, 256>}, {pipeline_mode = #tpu.pipeline_mode<synchronous>, transform_indices = @transform_1, window_bounds = array<i64: 256, 1024>}, {pipeline_mode = #tpu.pipeline_mode<synchronous>, transform_indices = @transform_2, window_bounds = array<i64: 1, 1024>}, {pipeline_mode = #tpu.pipeline_mode<synchronous>, transform_indices = @transform_3, window_bounds = array<i64: 1024, 128>}, {pipeline_mode = #tpu.pipeline_mode<synchronous>, transform_indices = @transform_4, window_bounds = array<i64: 1, 128>}, {transform_indices = @transform_5, window_bounds = array<i64: 16, 128>}]} {
    %c0 = arith.constant 0 : index
    %c0_0 = arith.constant 0 : index
    %0 = vector.load %arg1[%c0, %c0_0] : memref<16x256xbf16, #tpu.memory_space<vmem>>, vector<16x256xbf16>
    %c0_1 = arith.constant 0 : index
    %c0_2 = arith.constant 0 : index
    %1 = vector.load %arg2[%c0_1, %c0_2] : memref<256x1024xbf16, #tpu.memory_space<vmem>>, vector<256x1024xbf16>
    %cst = arith.constant dense<0.000000e+00> : vector<16x1024xf32>
    %2 = tpu.matmul %0, %1, %cst {dimension_numbers = #tpu.dot_dimension_numbers<[1], [0], [0], [1], [0, 0, 1, 1], [], []>} : vector<16x256xbf16>, vector<256x1024xbf16>, vector<16x1024xf32> -> vector<16x1024xf32>
    %c0_3 = arith.constant 0 : index
    %c0_4 = arith.constant 0 : index
    %3 = vector.load %arg3[%c0_3, %c0_4] : memref<1x1024xf32, #tpu.memory_space<vmem>>, vector<1x1024xf32>
    %4 = vector.broadcast %3 : vector<1x1024xf32> to vector<16x1024xf32>
    %5 = arith.addf %2, %4 : vector<16x1024xf32>
    %cst_5 = arith.constant 0.000000e+00 : f32
    %6 = vector.broadcast %cst_5 : f32 to vector<16x1024xf32>
    %7 = arith.maximumf %5, %6 : vector<16x1024xf32>
    %8 = arith.truncf %7 : vector<16x1024xf32> to vector<16x1024xbf16>
    %c0_6 = arith.constant 0 : index
    %c0_7 = arith.constant 0 : index
    %9 = vector.load %arg4[%c0_6, %c0_7] : memref<1024x128xbf16, #tpu.memory_space<vmem>>, vector<1024x128xbf16>
    %cst_8 = arith.constant dense<0.000000e+00> : vector<16x128xf32>
    %10 = tpu.matmul %8, %9, %cst_8 {dimension_numbers = #tpu.dot_dimension_numbers<[1], [0], [0], [1], [0, 0, 1, 1], [], []>} : vector<16x1024xbf16>, vector<1024x128xbf16>, vector<16x128xf32> -> vector<16x128xf32>
    %c0_9 = arith.constant 0 : index
    %c0_10 = arith.constant 0 : index
    %11 = vector.load %arg5[%c0_9, %c0_10] : memref<1x128xf32, #tpu.memory_space<vmem>>, vector<1x128xf32>
    %12 = vector.broadcast %11 : vector<1x128xf32> to vector<16x128xf32>
    %13 = arith.addf %10, %12 : vector<16x128xf32>
    %c0_11 = arith.constant 0 : index
    %c0_12 = arith.constant 0 : index
    %14 = vector.load %arg6[%c0_11, %c0_12] : memref<16x128xf32, #tpu.memory_space<vmem>>, vector<16x128xf32>
    tpu.vector_store %arg6[%c0_11, %c0_12], %13 {strides = array<i32>} : memref<16x128xf32, #tpu.memory_space<vmem>>, vector<16x128xf32>,
    return
  }
  func.func @transform_0(%arg0: i32) -> (i32, i32) {
    %c0_i32 = arith.constant 0 : i32
    %c0_i32_0 = arith.constant 0 : i32
    return %arg0, %c0_i32 : i32, i32
  }
  func.func @transform_1(%arg0: i32) -> (i32, i32) {
    %c0_i32 = arith.constant 0 : i32
    %c0_i32_0 = arith.constant 0 : i32
    %c0_i32_1 = arith.constant 0 : i32
    return %c0_i32, %c0_i32_0 : i32, i32
  }
  func.func @transform_2(%arg0: i32) -> (i32, i32) {
    %c0_i32 = arith.constant 0 : i32
    %c0_i32_0 = arith.constant 0 : i32
    %c0_i32_1 = arith.constant 0 : i32
    return %c0_i32, %c0_i32_0 : i32, i32
  }
  func.func @transform_3(%arg0: i32) -> (i32, i32) {
    %c0_i32 = arith.constant 0 : i32
    %c0_i32_0 = arith.constant 0 : i32
    %c0_i32_1 = arith.constant 0 : i32
    return %c0_i32, %c0_i32_0 : i32, i32
  }
  func.func @transform_4(%arg0: i32) -> (i32, i32) {
    %c0_i32 = arith.constant 0 : i32
    %c0_i32_0 = arith.constant 0 : i32
    %c0_i32_1 = arith.constant 0 : i32
    return %c0_i32, %c0_i32_0 : i32, i32
  }
  func.func @transform_5(%arg0: i32) -> (i32, i32) {
    %c0_i32 = arith.constant 0 : i32
    %c0_i32_0 = arith.constant 0 : i32
    return %arg0, %c0_i32 : i32, i32
  }
}

</mosaic_0001>

<llo_original>
// kernel: tpu_custom_call.1
$region0: #{tpu_custom_call.1}
  #allocation0 [shape = 'u32[]', space=smem, size = 0x4, offset = 0x4, fixed_abs, tag = 'smem constant byte address 0x4 - core index']
  #allocation1 [shape = 'u32[144,128]{1,0:T(1,128)}', space=vmem, size = 0x12000, scoped, tag = 'internal scratch']
  %s0 = inlined_call_operand.hbm [shape: bf16[16,256], index: 0, kind: input, shape index: {}]
  %s1 = inlined_call_operand.hbm [shape: bf16[256,1024], index: 1, kind: input, shape index: {}]
  %s2 = inlined_call_operand.hbm [shape: f32[1,1024], index: 2, kind: input, shape index: {}]
  %s3 = inlined_call_operand.hbm [shape: bf16[1024,128], index: 3, kind: input, shape index: {}]
  %s4 = inlined_call_operand.vmem [shape: f32[1,128], index: 4, kind: input, shape index: {}]
  %s5 = inlined_call_operand.hbm [shape: f32[16,128], index: 5, kind: output, shape index: {}]
  %s6 = sld [smem:[#allocation0]]
  $region46: #{tpu_custom_call.1} parent=0
    _
  %s8 = ssub.s32 1, %s6
  %s9 = scalar_select 0, %s8, %s6
  $region1: #{tpu_custom_call.1} parent=0
    #allocation2 [shape = 'u8[8192]{0}', space=vmem, size = 0x2000, scoped, tag = 'input window, operand 0, single buffered']
    #allocation3 [shape = 's32[1]{0}', space=sflag, size = 0x4, scoped, tag = 'scoped memory for tpu_custom_call.1']
    #allocation4 [shape = 's32[1]{0}', space=sflag, size = 0x4, scoped, tag = 'scoped memory for tpu_custom_call.1']
    #allocation5 [shape = 'u8[524288]{0}', space=vmem, size = 0x80000, scoped, tag = 'input window, operand 1, single buffered']
    #allocation6 [shape = 's32[1]{0}', space=sflag, size = 0x4, scoped, tag = 'scoped memory for tpu_custom_call.1']
    #allocation7 [shape = 'u8[4096]{0}', space=vmem, size = 0x1000, scoped, tag = 'input window, operand 2, single buffered']
    #allocation8 [shape = 'u8[262144]{0}', space=vmem, size = 0x40000, scoped, tag = 'input window, operand 3, single buffered']
    #allocation9 [shape = 's32[1]{0}', space=sflag, size = 0x4, scoped, tag = 'scoped memory for tpu_custom_call.1']
    #allocation10 [shape = 'u8[8192]{0}', space=vmem, size = 0x2000, scoped, tag = 'output window, operand 0, single buffered']
    %10 = vsyncpa [#allocation3], 0
    %11 = vsyncpa [#allocation6], 0
    %12 = vsyncpa [#allocation9], 0
    %13 = vsyncpa [#allocation4], 0
    // Predicated region
    $region2: #{tpu_custom_call.1} parent=1 // pred_check
      _
    $region3: #{tpu_custom_call.1} parent=1 // pred_check_branch
      %15 = sbr.rel (0) target = $region5
    $region4: #{tpu_custom_call.1} parent=1 // pred_region
      %s17 = ssub.s32 256, 256
      %18 = vsyncadd [#allocation3], %s17
      %s19 = sshll.u32 [#allocation2], 4
      %s20 = int_to_ptr.vmem [resolvable:$true] %s19
      %25 = dma.hbm_to_vmem [thread:$0]  %s0, 256, %s20, [#allocation3], 128, 128, 8
    $region5: #{tpu_custom_call.1} parent=1 // pred_fallthru
      _
    // Predicated region
    $region6: #{tpu_custom_call.1} parent=1 // pred_check
      _
    $region7: #{tpu_custom_call.1} parent=1 // pred_check_branch
      %27 = sbr.rel (0) target = $region9
    $region8: #{tpu_custom_call.1} parent=1 // pred_region
      %s29 = ssub.s32 16384, 16384
      %30 = vsyncadd [#allocation6], %s29
      %s31 = sshll.u32 [#allocation5], 4
      %s32 = int_to_ptr.vmem [resolvable:$true] %s31
      %37 = dma.hbm_to_vmem [thread:$0]  %s1, 16384, %s32, [#allocation6], 512, 512, 32
    $region9: #{tpu_custom_call.1} parent=1 // pred_fallthru
      _
    // Predicated region
    $region10: #{tpu_custom_call.1} parent=1 // pred_check
      _
    $region11: #{tpu_custom_call.1} parent=1 // pred_check_branch
      %39 = sbr.rel (0) target = $region13
    $region12: #{tpu_custom_call.1} parent=1 // pred_region
      %s41 = ssub.s32 128, 128
      %42 = vsyncadd [#allocation6], %s41
      %s44 = sshll.u32 [#allocation7], 4
      %s45 = int_to_ptr.vmem [resolvable:$true] %s44
      %47 = dma.hbm_to_vmem [thread:$0]  %s2, 128, %s45, [#allocation6]
    $region13: #{tpu_custom_call.1} parent=1 // pred_fallthru
      _
    // Predicated region
    $region14: #{tpu_custom_call.1} parent=1 // pred_check
      _
    $region15: #{tpu_custom_call.1} parent=1 // pred_check_branch
      %49 = sbr.rel (0) target = $region17
    $region16: #{tpu_custom_call.1} parent=1 // pred_region
      %s51 = ssub.s32 8192, 8192
      %52 = vsyncadd [#allocation9], %s51
      %s53 = sshll.u32 [#allocation8], 4
      %s54 = int_to_ptr.vmem [resolvable:$true] %s53
      %59 = dma.hbm_to_vmem [thread:$0]  %s3, 8192, %s54, [#allocation9], 64, 64, 4
    $region17: #{tpu_custom_call.1} parent=1 // pred_fallthru
      _
    // Predicated region
    $region18: #{tpu_custom_call.1} parent=1 // pred_check
      _
    $region19: #{tpu_custom_call.1} parent=1 // pred_check_branch
      %61 = sbr.rel (0) target = $region21
    $region20: #{tpu_custom_call.1} parent=1 // pred_region
      _
    $region21: #{tpu_custom_call.1} parent=1 // pred_fallthru
      _
    // Predicated region
    $region22: #{tpu_custom_call.1} parent=1 // pred_check
      _
    $region23: #{tpu_custom_call.1} parent=1 // pred_check_branch
      %63 = sbr.rel (0) target = $region25
    $region24: #{tpu_custom_call.1} parent=1 // pred_region
      %64 = dma.done [#allocation3], 256
    $region25: #{tpu_custom_call.1} parent=1 // pred_fallthru
      _
    // Predicated region
    $region26: #{tpu_custom_call.1} parent=1 // pred_check
      _
    $region27: #{tpu_custom_call.1} parent=1 // pred_check_branch
      %66 = sbr.rel (0) target = $region29
    $region28: #{tpu_custom_call.1} parent=1 // pred_region
      %67 = dma.done [#allocation6], 16384
    $region29: #{tpu_custom_call.1} parent=1 // pred_fallthru
      _
    // Predicated region
    $region30: #{tpu_custom_call.1} parent=1 // pred_check
      _
    $region31: #{tpu_custom_call.1} parent=1 // pred_check_branch
      %69 = sbr.rel (0) target = $region33
    $region32: #{tpu_custom_call.1} parent=1 // pred_region
      %70 = dma.done [#allocation6], 128
    $region33: #{tpu_custom_call.1} parent=1 // pred_fallthru
      _
    // Predicated region
    $region34: #{tpu_custom_call.1} parent=1 // pred_check
      _
    $region35: #{tpu_custom_call.1} parent=1 // pred_check_branch
      %72 = sbr.rel (0) target = $region37
    $region36: #{tpu_custom_call.1} parent=1 // pred_region
      %73 = dma.done [#allocation9], 8192
    $region37: #{tpu_custom_call.1} parent=1 // pred_fallthru
      _
    %v75 = vld [vmem:[#allocation2] sm:$0xff]
    %v76 = vld [vmem:[#allocation2 + $0x8] sm:$0xff]
    %v77 = vld [vmem:[#allocation5] sm:$0xff]
    %v78 = vld [vmem:[#allocation5 + $0x8] sm:$0xff]
    %v79 = vld [vmem:[#allocation5 + $0x10] sm:$0xff]
    %v80 = vld [vmem:[#allocation5 + $0x18] sm:$0xff]
    %v81 = vld [vmem:[#allocation5 + $0x20] sm:$0xff]
    %v82 = vld [vmem:[#allocation5 + $0x28] sm:$0xff]
    %v83 = vld [vmem:[#allocation5 + $0x30] sm:$0xff]
    %v84 = vld [vmem:[#allocation5 + $0x38] sm:$0xff]
    %v85 = vld [vmem:[#allocation5 + $0x40] sm:$0xff]
    %v86 = vld [vmem:[#allocation5 + $0x48] sm:$0xff]
    %v87 = vld [vmem:[#allocation5 + $0x50] sm:$0xff]
    %v88 = vld [vmem:[#allocation5 + $0x58] sm:$0xff]
    %v89 = vld [vmem:[#allocation5 + $0x60] sm:$0xff]
    %v90 = vld [vmem:[#allocation5 + $0x68] sm:$0xff]
    %v91 = vld [vmem:[#allocation5 + $0x70] sm:$0xff]
    %v92 = vld [vmem:[#allocation5 + $0x78] sm:$0xff]
    %v93 = vld [vmem:[#allocation5 + $0x80] sm:$0xff]
    %v94 = vld [vmem:[#allocation5 + $0x88] sm:$0xff]
    %v95 = vld [vmem:[#allocation5 + $0x90] sm:$0xff]
    %v96 = vld [vmem:[#allocation5 + $0x98] sm:$0xff]
    %v97 = vld [vmem:[#allocation5 + $0xa0] sm:$0xff]
    %v98 = vld [vmem:[#allocation5 + $0xa8] sm:$0xff]
    %v99 = vld [vmem:[#allocation5 + $0xb0] sm:$0xff]
    %v100 = vld [vmem:[#allocation5 + $0xb8] sm:$0xff]
    %v101 = vld [vmem:[#allocation5 + $0xc0] sm:$0xff]
    %v102 = vld [vmem:[#allocation5 + $0xc8] sm:$0xff]
    %v103 = vld [vmem:[#allocation5 + $0xd0] sm:$0xff]
    %v104 = vld [vmem:[#allocation5 + $0xd8] sm:$0xff]
    %v105 = vld [vmem:[#allocation5 + $0xe0] sm:$0xff]
    %v106 = vld [vmem:[#allocation5 + $0xe8] sm:$0xff]
    %v107 = vld [vmem:[#allocation5 + $0xf0] sm:$0xff]
    %v108 = vld [vmem:[#allocation5 + $0xf8] sm:$0xff]
    %v109 = vld [vmem:[#allocation5 + $0x100] sm:$0xff]
    %v110 = vld [vmem:[#allocation5 + $0x108] sm:$0xff]
    %v111 = vld [vmem:[#allocation5 + $0x110] sm:$0xff]
    %v112 = vld [vmem:[#allocation5 + $0x118] sm:$0xff]
    %v113 = vld [vmem:[#allocation5 + $0x120] sm:$0xff]
    %v114 = vld [vmem:[#allocation5 + $0x128] sm:$0xff]
    %v115 = vld [vmem:[#allocation5 + $0x130] sm:$0xff]
    %v116 = vld [vmem:[#allocation5 + $0x138] sm:$0xff]
    %v117 = vld [vmem:[#allocation5 + $0x140] sm:$0xff]
    %v118 = vld [vmem:[#allocation5 + $0x148] sm:$0xff]
    %v119 = vld [vmem:[#allocation5 + $0x150] sm:$0xff]
    %v120 = vld [vmem:[#allocation5 + $0x158] sm:$0xff]
    %v121 = vld [vmem:[#allocation5 + $0x160] sm:$0xff]
    %v122 = vld [vmem:[#allocation5 + $0x168] sm:$0xff]
    %v123 = vld [vmem:[#allocation5 + $0x170] sm:$0xff]
    %v124 = vld [vmem:[#allocation5 + $0x178] sm:$0xff]
    %v125 = vld [vmem:[#allocation5 + $0x180] sm:$0xff]
    %v126 = vld [vmem:[#allocation5 + $0x188] sm:$0xff]
    %v127 = vld [vmem:[#allocation5 + $0x190] sm:$0xff]
    %v128 = vld [vmem:[#allocation5 + $0x198] sm:$0xff]
    %v129 = vld [vmem:[#allocation5 + $0x1a0] sm:$0xff]
    %v130 = vld [vmem:[#allocation5 + $0x1a8] sm:$0xff]
    %v131 = vld [vmem:[#allocation5 + $0x1b0] sm:$0xff]
    %v132 = vld [vmem:[#allocation5 + $0x1b8] sm:$0xff]
    %v133 = vld [vmem:[#allocation5 + $0x1c0] sm:$0xff]
    %v134 = vld [vmem:[#allocation5 + $0x1c8] sm:$0xff]
    %v135 = vld [vmem:[#allocation5 + $0x1d0] sm:$0xff]
    %v136 = vld [vmem:[#allocation5 + $0x1d8] sm:$0xff]
    %v137 = vld [vmem:[#allocation5 + $0x1e0] sm:$0xff]
    %v138 = vld [vmem:[#allocation5 + $0x1e8] sm:$0xff]
    %v139 = vld [vmem:[#allocation5 + $0x1f0] sm:$0xff]
    %v140 = vld [vmem:[#allocation5 + $0x1f8] sm:$0xff]
    %v141 = vld [vmem:[#allocation5 + $0x200] sm:$0xff]
    %v142 = vld [vmem:[#allocation5 + $0x208] sm:$0xff]
    %v143 = vld [vmem:[#allocation5 + $0x210] sm:$0xff]
    %v144 = vld [vmem:[#allocation5 + $0x218] sm:$0xff]
    %v145 = vld [vmem:[#allocation5 + $0x220] sm:$0xff]
    %v146 = vld [vmem:[#allocation5 + $0x228] sm:$0xff]
    %v147 = vld [vmem:[#allocation5 + $0x230] sm:$0xff]
    %v148 = vld [vmem:[#allocation5 + $0x238] sm:$0xff]
    %v149 = vld [vmem:[#allocation5 + $0x240] sm:$0xff]
    %v150 = vld [vmem:[#allocation5 + $0x248] sm:$0xff]
    %v151 = vld [vmem:[#allocation5 + $0x250] sm:$0xff]
    %v152 = vld [vmem:[#allocation5 + $0x258] sm:$0xff]
    %v153 = vld [vmem:[#allocation5 + $0x260] sm:$0xff]
    %v154 = vld [vmem:[#allocation5 + $0x268] sm:$0xff]
    %v155 = vld [vmem:[#allocation5 + $0x270] sm:$0xff]
    %v156 = vld [vmem:[#allocation5 + $0x278] sm:$0xff]
    %v157 = vld [vmem:[#allocation5 + $0x280] sm:$0xff]
    %v158 = vld [vmem:[#allocation5 + $0x288] sm:$0xff]
    %v159 = vld [vmem:[#allocation5 + $0x290] sm:$0xff]
    %v160 = vld [vmem:[#allocation5 + $0x298] sm:$0xff]
    %v161 = vld [vmem:[#allocation5 + $0x2a0] sm:$0xff]
    %v162 = vld [vmem:[#allocation5 + $0x2a8] sm:$0xff]
    %v163 = vld [vmem:[#allocation5 + $0x2b0] sm:$0xff]
    %v164 = vld [vmem:[#allocation5 + $0x2b8] sm:$0xff]
    %v165 = vld [vmem:[#allocation5 + $0x2c0] sm:$0xff]
    %v166 = vld [vmem:[#allocation5 + $0x2c8] sm:$0xff]
    %v167 = vld [vmem:[#allocation5 + $0x2d0] sm:$0xff]
    %v168 = vld [vmem:[#allocation5 + $0x2d8] sm:$0xff]
    %v169 = vld [vmem:[#allocation5 + $0x2e0] sm:$0xff]
    %v170 = vld [vmem:[#allocation5 + $0x2e8] sm:$0xff]
    %v171 = vld [vmem:[#allocation5 + $0x2f0] sm:$0xff]
    %v172 = vld [vmem:[#allocation5 + $0x2f8] sm:$0xff]
    %v173 = vld [vmem:[#allocation5 + $0x300] sm:$0xff]
    %v174 = vld [vmem:[#allocation5 + $0x308] sm:$0xff]
    %v175 = vld [vmem:[#allocation5 + $0x310] sm:$0xff]
    %v176 = vld [vmem:[#allocation5 + $0x318] sm:$0xff]
    %v177 = vld [vmem:[#allocation5 + $0x320] sm:$0xff]
    %v178 = vld [vmem:[#allocation5 + $0x328] sm:$0xff]
    %v179 = vld [vmem:[#allocation5 + $0x330] sm:$0xff]
    %v180 = vld [vmem:[#allocation5 + $0x338] sm:$0xff]
    %v181 = vld [vmem:[#allocation5 + $0x340] sm:$0xff]
    %v182 = vld [vmem:[#allocation5 + $0x348] sm:$0xff]
    %v183 = vld [vmem:[#allocation5 + $0x350] sm:$0xff]
    %v184 = vld [vmem:[#allocation5 + $0x358] sm:$0xff]
    %v185 = vld [vmem:[#allocation5 + $0x360] sm:$0xff]
    %v186 = vld [vmem:[#allocation5 + $0x368] sm:$0xff]
    %v187 = vld [vmem:[#allocation5 + $0x370] sm:$0xff]
    %v188 = vld [vmem:[#allocation5 + $0x378] sm:$0xff]
    %v189 = vld [vmem:[#allocation5 + $0x380] sm:$0xff]
    %v190 = vld [vmem:[#allocation5 + $0x388] sm:$0xff]
    %v191 = vld [vmem:[#allocation5 + $0x390] sm:$0xff]
    %v192 = vld [vmem:[#allocation5 + $0x398] sm:$0xff]
    %v193 = vld [vmem:[#allocation5 + $0x3a0] sm:$0xff]
    %v194 = vld [vmem:[#allocation5 + $0x3a8] sm:$0xff]
    %v195 = vld [vmem:[#allocation5 + $0x3b0] sm:$0xff]
    %v196 = vld [vmem:[#allocation5 + $0x3b8] sm:$0xff]
    %v197 = vld [vmem:[#allocation5 + $0x3c0] sm:$0xff]
    %v198 = vld [vmem:[#allocation5 + $0x3c8] sm:$0xff]
    %v199 = vld [vmem:[#allocation5 + $0x3d0] sm:$0xff]
    %v200 = vld [vmem:[#allocation5 + $0x3d8] sm:$0xff]
    %v201 = vld [vmem:[#allocation5 + $0x3e0] sm:$0xff]
    %v202 = vld [vmem:[#allocation5 + $0x3e8] sm:$0xff]
    %v203 = vld [vmem:[#allocation5 + $0x3f0] sm:$0xff]
    %v204 = vld [vmem:[#allocation5 + $0x3f8] sm:$0xff]
    %v205 = vld [vmem:[#allocation7] sm:$0xff]
    %v207 = vlaneseq
    %v208 = vshrl.u32 %v207, 7
    %v209 = vsub.s32 0, %v208
    %v210 = vrot.slane %v205, %v209
    %v211 = vlaneseq
    %v212 = vshrl.u32 %v211, 7
    %v213 = vsub.s32 1, %v212
    %v214 = vrot.slane %v205, %v213
    %v215 = vlaneseq
    %v216 = vshrl.u32 %v215, 7
    %v217 = vsub.s32 2, %v216
    %v218 = vrot.slane %v205, %v217
    %v219 = vlaneseq
    %v220 = vshrl.u32 %v219, 7
    %v221 = vsub.s32 3, %v220
    %v222 = vrot.slane %v205, %v221
    %v223 = vlaneseq
    %v224 = vshrl.u32 %v223, 7
    %v225 = vsub.s32 4, %v224
    %v226 = vrot.slane %v205, %v225
    %v227 = vlaneseq
    %v228 = vshrl.u32 %v227, 7
    %v229 = vsub.s32 5, %v228
    %v230 = vrot.slane %v205, %v229
    %v231 = vlaneseq
    %v232 = vshrl.u32 %v231, 7
    %v233 = vsub.s32 6, %v232
    %v234 = vrot.slane %v205, %v233
    %v235 = vlaneseq
    %v236 = vshrl.u32 %v235, 7
    %v237 = vsub.s32 7, %v236
    %v238 = vrot.slane %v205, %v237
    %v249 = vunpack.c.l.b16 %v75
    %v250 = vunpack.c.h.b16 %v75
    %v251 = vunpack.c.l.b16 %v76
    %v252 = vunpack.c.h.b16 %v76
    %v253 = vpack.c.b16 %v251, %v249
    %v254 = vpack.c.b16 %v252, %v250
    %v385 = vunpack.c.l.b16 %v77
    %v386 = vunpack.c.h.b16 %v77
    %v387 = vunpack.c.l.b16 %v78
    %v388 = vunpack.c.h.b16 %v78
    %v389 = vunpack.c.l.b16 %v79
    %v390 = vunpack.c.h.b16 %v79
    %v391 = vunpack.c.l.b16 %v80
    %v392 = vunpack.c.h.b16 %v80
    %v393 = vunpack.c.l.b16 %v81
    %v394 = vunpack.c.h.b16 %v81
    %v395 = vunpack.c.l.b16 %v82
    %v396 = vunpack.c.h.b16 %v82
    %v397 = vunpack.c.l.b16 %v83
    %v398 = vunpack.c.h.b16 %v83
    %v399 = vunpack.c.l.b16 %v84
    %v400 = vunpack.c.h.b16 %v84
    %v401 = vunpack.c.l.b16 %v85
    %v402 = vunpack.c.h.b16 %v85
    %v403 = vunpack.c.l.b16 %v86
    %v404 = vunpack.c.h.b16 %v86
    %v405 = vunpack.c.l.b16 %v87
    %v406 = vunpack.c.h.b16 %v87
    %v407 = vunpack.c.l.b16 %v88
    %v408 = vunpack.c.h.b16 %v88
    %v409 = vunpack.c.l.b16 %v89
    %v410 = vunpack.c.h.b16 %v89
    %v411 = vunpack.c.l.b16 %v90
    %v412 = vunpack.c.h.b16 %v90
    %v413 = vunpack.c.l.b16 %v91
    %v414 = vunpack.c.h.b16 %v91
    %v415 = vunpack.c.l.b16 %v92
    %v416 = vunpack.c.h.b16 %v92
    %v417 = vunpack.c.l.b16 %v93
    %v418 = vunpack.c.h.b16 %v93
    %v419 = vunpack.c.l.b16 %v94
    %v420 = vunpack.c.h.b16 %v94
    %v421 = vunpack.c.l.b16 %v95
    %v422 = vunpack.c.h.b16 %v95
    %v423 = vunpack.c.l.b16 %v96
    %v424 = vunpack.c.h.b16 %v96
    %v425 = vunpack.c.l.b16 %v97
    %v426 = vunpack.c.h.b16 %v97
    %v427 = vunpack.c.l.b16 %v98
    %v428 = vunpack.c.h.b16 %v98
    %v429 = vunpack.c.l.b16 %v99
    %v430 = vunpack.c.h.b16 %v99
    %v431 = vunpack.c.l.b16 %v100
    %v432 = vunpack.c.h.b16 %v100
    %v433 = vunpack.c.l.b16 %v101
    %v434 = vunpack.c.h.b16 %v101
    %v435 = vunpack.c.l.b16 %v102
    %v436 = vunpack.c.h.b16 %v102
    %v437 = vunpack.c.l.b16 %v103
    %v438 = vunpack.c.h.b16 %v103
    %v439 = vunpack.c.l.b16 %v104
    %v440 = vunpack.c.h.b16 %v104
    %v441 = vunpack.c.l.b16 %v105
    %v442 = vunpack.c.h.b16 %v105
    %v443 = vunpack.c.l.b16 %v106
    %v444 = vunpack.c.h.b16 %v106
    %v445 = vunpack.c.l.b16 %v107
    %v446 = vunpack.c.h.b16 %v107
    %v447 = vunpack.c.l.b16 %v108
    %v448 = vunpack.c.h.b16 %v108
    %v449 = vunpack.c.l.b16 %v109
    %v450 = vunpack.c.h.b16 %v109
    %v451 = vunpack.c.l.b16 %v110
    %v452 = vunpack.c.h.b16 %v110
    %v453 = vunpack.c.l.b16 %v111
    %v454 = vunpack.c.h.b16 %v111
    %v455 = vunpack.c.l.b16 %v112
    %v456 = vunpack.c.h.b16 %v112
    %v457 = vunpack.c.l.b16 %v113
    %v458 = vunpack.c.h.b16 %v113
    %v459 = vunpack.c.l.b16 %v114
    %v460 = vunpack.c.h.b16 %v114
    %v461 = vunpack.c.l.b16 %v115
    %v462 = vunpack.c.h.b16 %v115
    %v463 = vunpack.c.l.b16 %v116
    %v464 = vunpack.c.h.b16 %v116
    %v465 = vunpack.c.l.b16 %v117
    %v466 = vunpack.c.h.b16 %v117
    %v467 = vunpack.c.l.b16 %v118
    %v468 = vunpack.c.h.b16 %v118
    %v469 = vunpack.c.l.b16 %v119
    %v470 = vunpack.c.h.b16 %v119
    %v471 = vunpack.c.l.b16 %v120
    %v472 = vunpack.c.h.b16 %v120
    %v473 = vunpack.c.l.b16 %v121
    %v474 = vunpack.c.h.b16 %v121
    %v475 = vunpack.c.l.b16 %v122
    %v476 = vunpack.c.h.b16 %v122
    %v477 = vunpack.c.l.b16 %v123
    %v478 = vunpack.c.h.b16 %v123
    %v479 = vunpack.c.l.b16 %v124
    %v480 = vunpack.c.h.b16 %v124
    %v481 = vunpack.c.l.b16 %v125
    %v482 = vunpack.c.h.b16 %v125
    %v483 = vunpack.c.l.b16 %v126
    %v484 = vunpack.c.h.b16 %v126
    %v485 = vunpack.c.l.b16 %v127
    %v486 = vunpack.c.h.b16 %v127
    %v487 = vunpack.c.l.b16 %v128
    %v488 = vunpack.c.h.b16 %v128
    %v489 = vunpack.c.l.b16 %v129
    %v490 = vunpack.c.h.b16 %v129
    %v491 = vunpack.c.l.b16 %v130
    %v492 = vunpack.c.h.b16 %v130
    %v493 = vunpack.c.l.b16 %v131
    %v494 = vunpack.c.h.b16 %v131
    %v495 = vunpack.c.l.b16 %v132
    %v496 = vunpack.c.h.b16 %v132
    %v497 = vunpack.c.l.b16 %v133
    %v498 = vunpack.c.h.b16 %v133
    %v499 = vunpack.c.l.b16 %v134
    %v500 = vunpack.c.h.b16 %v134
    %v501 = vunpack.c.l.b16 %v135
    %v502 = vunpack.c.h.b16 %v135
    %v503 = vunpack.c.l.b16 %v136
    %v504 = vunpack.c.h.b16 %v136
    %v505 = vunpack.c.l.b16 %v137
    %v506 = vunpack.c.h.b16 %v137
    %v507 = vunpack.c.l.b16 %v138
    %v508 = vunpack.c.h.b16 %v138
    %v509 = vunpack.c.l.b16 %v139
    %v510 = vunpack.c.h.b16 %v139
    %v511 = vunpack.c.l.b16 %v140
    %v512 = vunpack.c.h.b16 %v140
    %v513 = vunpack.c.l.b16 %v141
    %v514 = vunpack.c.h.b16 %v141
    %v515 = vunpack.c.l.b16 %v142
    %v516 = vunpack.c.h.b16 %v142
    %v517 = vunpack.c.l.b16 %v143
    %v518 = vunpack.c.h.b16 %v143
    %v519 = vunpack.c.l.b16 %v144
    %v520 = vunpack.c.h.b16 %v144
    %v521 = vunpack.c.l.b16 %v145
    %v522 = vunpack.c.h.b16 %v145
    %v523 = vunpack.c.l.b16 %v146
    %v524 = vunpack.c.h.b16 %v146
    %v525 = vunpack.c.l.b16 %v147
    %v526 = vunpack.c.h.b16 %v147
    %v527 = vunpack.c.l.b16 %v148
    %v528 = vunpack.c.h.b16 %v148
    %v529 = vunpack.c.l.b16 %v149
    %v530 = vunpack.c.h.b16 %v149
    %v531 = vunpack.c.l.b16 %v150
    %v532 = vunpack.c.h.b16 %v150
    %v533 = vunpack.c.l.b16 %v151
    %v534 = vunpack.c.h.b16 %v151
    %v535 = vunpack.c.l.b16 %v152
    %v536 = vunpack.c.h.b16 %v152
    %v537 = vunpack.c.l.b16 %v153
    %v538 = vunpack.c.h.b16 %v153
    %v539 = vunpack.c.l.b16 %v154
    %v540 = vunpack.c.h.b16 %v154
    %v541 = vunpack.c.l.b16 %v155
    %v542 = vunpack.c.h.b16 %v155
    %v543 = vunpack.c.l.b16 %v156
    %v544 = vunpack.c.h.b16 %v156
    %v545 = vunpack.c.l.b16 %v157
    %v546 = vunpack.c.h.b16 %v157
    %v547 = vunpack.c.l.b16 %v158
    %v548 = vunpack.c.h.b16 %v158
    %v549 = vunpack.c.l.b16 %v159
    %v550 = vunpack.c.h.b16 %v159
    %v551 = vunpack.c.l.b16 %v160
    %v552 = vunpack.c.h.b16 %v160
    %v553 = vunpack.c.l.b16 %v161
    %v554 = vunpack.c.h.b16 %v161
    %v555 = vunpack.c.l.b16 %v162
    %v556 = vunpack.c.h.b16 %v162
    %v557 = vunpack.c.l.b16 %v163
    %v558 = vunpack.c.h.b16 %v163
    %v559 = vunpack.c.l.b16 %v164
    %v560 = vunpack.c.h.b16 %v164
    %v561 = vunpack.c.l.b16 %v165
    %v562 = vunpack.c.h.b16 %v165
    %v563 = vunpack.c.l.b16 %v166
    %v564 = vunpack.c.h.b16 %v166
    %v565 = vunpack.c.l.b16 %v167
    %v566 = vunpack.c.h.b16 %v167
    %v567 = vunpack.c.l.b16 %v168
    %v568 = vunpack.c.h.b16 %v168
    %v569 = vunpack.c.l.b16 %v169
    %v570 = vunpack.c.h.b16 %v169
    %v571 = vunpack.c.l.b16 %v170
    %v572 = vunpack.c.h.b16 %v170
    %v573 = vunpack.c.l.b16 %v171
    %v574 = vunpack.c.h.b16 %v171
    %v575 = vunpack.c.l.b16 %v172
    %v576 = vunpack.c.h.b16 %v172
    %v577 = vunpack.c.l.b16 %v173
    %v578 = vunpack.c.h.b16 %v173
    %v579 = vunpack.c.l.b16 %v174
    %v580 = vunpack.c.h.b16 %v174
    %v581 = vunpack.c.l.b16 %v175
    %v582 = vunpack.c.h.b16 %v175
    %v583 = vunpack.c.l.b16 %v176
    %v584 = vunpack.c.h.b16 %v176
    %v585 = vunpack.c.l.b16 %v177
    %v586 = vunpack.c.h.b16 %v177
    %v587 = vunpack.c.l.b16 %v178
    %v588 = vunpack.c.h.b16 %v178
    %v589 = vunpack.c.l.b16 %v179
    %v590 = vunpack.c.h.b16 %v179
    %v591 = vunpack.c.l.b16 %v180
    %v592 = vunpack.c.h.b16 %v180
    %v593 = vunpack.c.l.b16 %v181
    %v594 = vunpack.c.h.b16 %v181
    %v595 = vunpack.c.l.b16 %v182
    %v596 = vunpack.c.h.b16 %v182
    %v597 = vunpack.c.l.b16 %v183
    %v598 = vunpack.c.h.b16 %v183
    %v599 = vunpack.c.l.b16 %v184
    %v600 = vunpack.c.h.b16 %v184
    %v601 = vunpack.c.l.b16 %v185
    %v602 = vunpack.c.h.b16 %v185
    %v603 = vunpack.c.l.b16 %v186
    %v604 = vunpack.c.h.b16 %v186
    %v605 = vunpack.c.l.b16 %v187
    %v606 = vunpack.c.h.b16 %v187
    %v607 = vunpack.c.l.b16 %v188
    %v608 = vunpack.c.h.b16 %v188
    %v609 = vunpack.c.l.b16 %v189
    %v610 = vunpack.c.h.b16 %v189
    %v611 = vunpack.c.l.b16 %v190
    %v612 = vunpack.c.h.b16 %v190
    %v613 = vunpack.c.l.b16 %v191
    %v614 = vunpack.c.h.b16 %v191
    %v615 = vunpack.c.l.b16 %v192
    %v616 = vunpack.c.h.b16 %v192
    %v617 = vunpack.c.l.b16 %v193
    %v618 = vunpack.c.h.b16 %v193
    %v619 = vunpack.c.l.b16 %v194
    %v620 = vunpack.c.h.b16 %v194
    %v621 = vunpack.c.l.b16 %v195
    %v622 = vunpack.c.h.b16 %v195
    %v623 = vunpack.c.l.b16 %v196
    %v624 = vunpack.c.h.b16 %v196
    %v625 = vunpack.c.l.b16 %v197
    %v626 = vunpack.c.h.b16 %v197
    %v627 = vunpack.c.l.b16 %v198
    %v628 = vunpack.c.h.b16 %v198
    %v629 = vunpack.c.l.b16 %v199
    %v630 = vunpack.c.h.b16 %v199
    %v631 = vunpack.c.l.b16 %v200
    %v632 = vunpack.c.h.b16 %v200
    %v633 = vunpack.c.l.b16 %v201
    %v634 = vunpack.c.h.b16 %v201
    %v635 = vunpack.c.l.b16 %v202
    %v636 = vunpack.c.h.b16 %v202
    %v637 = vunpack.c.l.b16 %v203
    %v638 = vunpack.c.h.b16 %v203
    %v639 = vunpack.c.l.b16 %v204
    %v640 = vunpack.c.h.b16 %v204
    %v641 = vpack.c.b16 %v393, %v385
    %v642 = vpack.c.b16 %v394, %v386
    %v643 = vpack.c.b16 %v395, %v387
    %v644 = vpack.c.b16 %v396, %v388
    %v645 = vpack.c.b16 %v397, %v389
    %v646 = vpack.c.b16 %v398, %v390
    %v647 = vpack.c.b16 %v399, %v391
    %v648 = vpack.c.b16 %v400, %v392
    %v649 = vpack.c.b16 %v409, %v401
    %v650 = vpack.c.b16 %v410, %v402
    %v651 = vpack.c.b16 %v411, %v403
    %v652 = vpack.c.b16 %v412, %v404
    %v653 = vpack.c.b16 %v413, %v405
    %v654 = vpack.c.b16 %v414, %v406
    %v655 = vpack.c.b16 %v415, %v407
    %v656 = vpack.c.b16 %v416, %v408
    %v657 = vpack.c.b16 %v425, %v417
    %v658 = vpack.c.b16 %v426, %v418
    %v659 = vpack.c.b16 %v427, %v419
    %v660 = vpack.c.b16 %v428, %v420
    %v661 = vpack.c.b16 %v429, %v421
    %v662 = vpack.c.b16 %v430, %v422
    %v663 = vpack.c.b16 %v431, %v423
    %v664 = vpack.c.b16 %v432, %v424
    %v665 = vpack.c.b16 %v441, %v433
    %v666 = vpack.c.b16 %v442, %v434
    %v667 = vpack.c.b16 %v443, %v435
    %v668 = vpack.c.b16 %v444, %v436
    %v669 = vpack.c.b16 %v445, %v437
    %v670 = vpack.c.b16 %v446, %v438
    %v671 = vpack.c.b16 %v447, %v439
    %v672 = vpack.c.b16 %v448, %v440
    %v673 = vpack.c.b16 %v457, %v449
    %v674 = vpack.c.b16 %v458, %v450
    %v675 = vpack.c.b16 %v459, %v451
    %v676 = vpack.c.b16 %v460, %v452
    %v677 = vpack.c.b16 %v461, %v453
    %v678 = vpack.c.b16 %v462, %v454
    %v679 = vpack.c.b16 %v463, %v455
    %v680 = vpack.c.b16 %v464, %v456
    %v681 = vpack.c.b16 %v473, %v465
    %v682 = vpack.c.b16 %v474, %v466
    %v683 = vpack.c.b16 %v475, %v467
    %v684 = vpack.c.b16 %v476, %v468
    %v685 = vpack.c.b16 %v477, %v469
    %v686 = vpack.c.b16 %v478, %v470
    %v687 = vpack.c.b16 %v479, %v471
    %v688 = vpack.c.b16 %v480, %v472
    %v689 = vpack.c.b16 %v489, %v481
    %v690 = vpack.c.b16 %v490, %v482
    %v691 = vpack.c.b16 %v491, %v483
    %v692 = vpack.c.b16 %v492, %v484
    %v693 = vpack.c.b16 %v493, %v485
    %v694 = vpack.c.b16 %v494, %v486
    %v695 = vpack.c.b16 %v495, %v487
    %v696 = vpack.c.b16 %v496, %v488
    %v697 = vpack.c.b16 %v505, %v497
    %v698 = vpack.c.b16 %v506, %v498
    %v699 = vpack.c.b16 %v507, %v499
    %v700 = vpack.c.b16 %v508, %v500
    %v701 = vpack.c.b16 %v509, %v501
    %v702 = vpack.c.b16 %v510, %v502
    %v703 = vpack.c.b16 %v511, %v503
    %v704 = vpack.c.b16 %v512, %v504
    %v705 = vpack.c.b16 %v521, %v513
    %v706 = vpack.c.b16 %v522, %v514
    %v707 = vpack.c.b16 %v523, %v515
    %v708 = vpack.c.b16 %v524, %v516
    %v709 = vpack.c.b16 %v525, %v517
    %v710 = vpack.c.b16 %v526, %v518
    %v711 = vpack.c.b16 %v527, %v519
    %v712 = vpack.c.b16 %v528, %v520
    %v713 = vpack.c.b16 %v537, %v529
    %v714 = vpack.c.b16 %v538, %v530
    %v715 = vpack.c.b16 %v539, %v531
    %v716 = vpack.c.b16 %v540, %v532
    %v717 = vpack.c.b16 %v541, %v533
    %v718 = vpack.c.b16 %v542, %v534
    %v719 = vpack.c.b16 %v543, %v535
    %v720 = vpack.c.b16 %v544, %v536
    %v721 = vpack.c.b16 %v553, %v545
    %v722 = vpack.c.b16 %v554, %v546
    %v723 = vpack.c.b16 %v555, %v547
    %v724 = vpack.c.b16 %v556, %v548
    %v725 = vpack.c.b16 %v557, %v549
    %v726 = vpack.c.b16 %v558, %v550
    %v727 = vpack.c.b16 %v559, %v551
    %v728 = vpack.c.b16 %v560, %v552
    %v729 = vpack.c.b16 %v569, %v561
    %v730 = vpack.c.b16 %v570, %v562
    %v731 = vpack.c.b16 %v571, %v563
    %v732 = vpack.c.b16 %v572, %v564
    %v733 = vpack.c.b16 %v573, %v565
    %v734 = vpack.c.b16 %v574, %v566
    %v735 = vpack.c.b16 %v575, %v567
    %v736 = vpack.c.b16 %v576, %v568
    %v737 = vpack.c.b16 %v585, %v577
    %v738 = vpack.c.b16 %v586, %v578
    %v739 = vpack.c.b16 %v587, %v579
    %v740 = vpack.c.b16 %v588, %v580
    %v741 = vpack.c.b16 %v589, %v581
    %v742 = vpack.c.b16 %v590, %v582
    %v743 = vpack.c.b16 %v591, %v583
    %v744 = vpack.c.b16 %v592, %v584
    %v745 = vpack.c.b16 %v601, %v593
    %v746 = vpack.c.b16 %v602, %v594
    %v747 = vpack.c.b16 %v603, %v595
    %v748 = vpack.c.b16 %v604, %v596
    %v749 = vpack.c.b16 %v605, %v597
    %v750 = vpack.c.b16 %v606, %v598
    %v751 = vpack.c.b16 %v607, %v599
    %v752 = vpack.c.b16 %v608, %v600
    %v753 = vpack.c.b16 %v617, %v609
    %v754 = vpack.c.b16 %v618, %v610
    %v755 = vpack.c.b16 %v619, %v611
    %v756 = vpack.c.b16 %v620, %v612
    %v757 = vpack.c.b16 %v621, %v613
    %v758 = vpack.c.b16 %v622, %v614
    %v759 = vpack.c.b16 %v623, %v615
    %v760 = vpack.c.b16 %v624, %v616
    %v761 = vpack.c.b16 %v633, %v625
    %v762 = vpack.c.b16 %v634, %v626
    %v763 = vpack.c.b16 %v635, %v627
    %v764 = vpack.c.b16 %v636, %v628
    %v765 = vpack.c.b16 %v637, %v629
    %v766 = vpack.c.b16 %v638, %v630
    %v767 = vpack.c.b16 %v639, %v631
    %v768 = vpack.c.b16 %v640, %v632
    %897 = vmatprep.subr.bf16.mxu0 %v698
    %898 = vmatpush1.bf16.msra.mxu0 %v697
    %899 = vmatprep.subr.bf16.mxu0 %v690
    %900 = vmatpush1.bf16.msra.mxu0 %v689
    %901 = vmatprep.subr.bf16.mxu0 %v682
    %902 = vmatpush1.bf16.msra.mxu0 %v681
    %903 = vmatprep.subr.bf16.mxu0 %v674
    %904 = vmatpush1.bf16.msra.mxu0 %v673
    %905 = vmatprep.subr.bf16.mxu0 %v666
    %906 = vmatpush1.bf16.msra.mxu0 %v665
    %907 = vmatprep.subr.bf16.mxu0 %v658
    %908 = vmatpush1.bf16.msra.mxu0 %v657
    %909 = vmatprep.subr.bf16.mxu0 %v650
    %910 = vmatpush1.bf16.msra.mxu0 %v649
    %911 = vmatprep.subr.bf16.mxu0 %v642
    %912 = vmatpush1.bf16.msra.mxu0 %v641
    %913 = vmatprep.subr.bf16.mxu0 %v762
    %914 = vmatpush2.bf16.msra.mxu0 %v761
    %915 = vmatprep.subr.bf16.mxu0 %v754
    %916 = vmatpush2.bf16.msra.mxu0 %v753
    %917 = vmatprep.subr.bf16.mxu0 %v746
    %918 = vmatpush2.bf16.msra.mxu0 %v745
    %919 = vmatprep.subr.bf16.mxu0 %v738
    %920 = vmatpush2.bf16.msra.mxu0 %v737
    %921 = vmatprep.subr.bf16.mxu0 %v730
    %922 = vmatpush2.bf16.msra.mxu0 %v729
    %923 = vmatprep.subr.bf16.mxu0 %v722
    %924 = vmatpush2.bf16.msra.mxu0 %v721
    %925 = vmatprep.subr.bf16.mxu0 %v714
    %926 = vmatpush2.bf16.msra.mxu0 %v713
    %927 = vmatprep.subr.bf16.mxu0 %v706
    %928 = vmatpush2.bf16.msra.mxu0 %v705
    %929 = vmatprep.mubr.bf16.mxu0 %v254
    %930 = vmatmul.mubr.bf16.gmra.mxu0 %v253
    %v931 = vpop.f32.mrf.mxu0
    %v932 = vadd.f32 %v210, %v931
    %v933 = vpop.f32.mrf.mxu0
    %v934 = vadd.f32 %v214, %v933
    %v935 = vpop.f32.mrf.mxu0
    %v936 = vadd.f32 %v210, %v935
    %v937 = vpop.f32.mrf.mxu0
    %v938 = vadd.f32 %v214, %v937
    %939 = vdwg.mxu0
    %940 = vmatprep.subr.bf16.mxu0 %v700
    %941 = vmatpush1.bf16.msra.mxu0 %v699
    %942 = vmatprep.subr.bf16.mxu0 %v692
    %943 = vmatpush1.bf16.msra.mxu0 %v691
    %944 = vmatprep.subr.bf16.mxu0 %v684
    %945 = vmatpush1.bf16.msra.mxu0 %v683
    %946 = vmatprep.subr.bf16.mxu0 %v676
    %947 = vmatpush1.bf16.msra.mxu0 %v675
    %948 = vmatprep.subr.bf16.mxu0 %v668
    %949 = vmatpush1.bf16.msra.mxu0 %v667
    %950 = vmatprep.subr.bf16.mxu0 %v660
    %951 = vmatpush1.bf16.msra.mxu0 %v659
    %952 = vmatprep.subr.bf16.mxu0 %v652
    %953 = vmatpush1.bf16.msra.mxu0 %v651
    %954 = vmatprep.subr.bf16.mxu0 %v644
    %955 = vmatpush1.bf16.msra.mxu0 %v643
    %956 = vmatprep.subr.bf16.mxu0 %v764
    %957 = vmatpush2.bf16.msra.mxu0 %v763
    %958 = vmatprep.subr.bf16.mxu0 %v756
    %959 = vmatpush2.bf16.msra.mxu0 %v755
    %960 = vmatprep.subr.bf16.mxu0 %v748
    %961 = vmatpush2.bf16.msra.mxu0 %v747
    %962 = vmatprep.subr.bf16.mxu0 %v740
    %963 = vmatpush2.bf16.msra.mxu0 %v739
    %964 = vmatprep.subr.bf16.mxu0 %v732
    %965 = vmatpush2.bf16.msra.mxu0 %v731
    %966 = vmatprep.subr.bf16.mxu0 %v724
    %967 = vmatpush2.bf16.msra.mxu0 %v723
    %968 = vmatprep.subr.bf16.mxu0 %v716
    %969 = vmatpush2.bf16.msra.mxu0 %v715
    %970 = vmatprep.subr.bf16.mxu0 %v708
    %971 = vmatpush2.bf16.msra.mxu0 %v707
    %972 = vmatprep.mubr.bf16.mxu0 %v254
    %973 = vmatmul.mubr.bf16.gmra.mxu0 %v253
    %v974 = vpop.f32.mrf.mxu0
    %v975 = vadd.f32 %v218, %v974
    %v976 = vpop.f32.mrf.mxu0
    %v977 = vadd.f32 %v222, %v976
    %v978 = vpop.f32.mrf.mxu0
    %v979 = vadd.f32 %v218, %v978
    %v980 = vpop.f32.mrf.mxu0
    %v981 = vadd.f32 %v222, %v980
    %982 = vdwg.mxu0
    %983 = vmatprep.subr.bf16.mxu0 %v702
    %984 = vmatpush1.bf16.msra.mxu0 %v701
    %985 = vmatprep.subr.bf16.mxu0 %v694
    %986 = vmatpush1.bf16.msra.mxu0 %v693
    %987 = vmatprep.subr.bf16.mxu0 %v686
    %988 = vmatpush1.bf16.msra.mxu0 %v685
    %989 = vmatprep.subr.bf16.mxu0 %v678
    %990 = vmatpush1.bf16.msra.mxu0 %v677
    %991 = vmatprep.subr.bf16.mxu0 %v670
    %992 = vmatpush1.bf16.msra.mxu0 %v669
    %993 = vmatprep.subr.bf16.mxu0 %v662
    %994 = vmatpush1.bf16.msra.mxu0 %v661
    %995 = vmatprep.subr.bf16.mxu0 %v654
    %996 = vmatpush1.bf16.msra.mxu0 %v653
    %997 = vmatprep.subr.bf16.mxu0 %v646
    %998 = vmatpush1.bf16.msra.mxu0 %v645
    %999 = vmatprep.subr.bf16.mxu0 %v766
    %1000 = vmatpush2.bf16.msra.mxu0 %v765
    %1001 = vmatprep.subr.bf16.mxu0 %v758
    %1002 = vmatpush2.bf16.msra.mxu0 %v757
    %1003 = vmatprep.subr.bf16.mxu0 %v750
    %1004 = vmatpush2.bf16.msra.mxu0 %v749
    %1005 = vmatprep.subr.bf16.mxu0 %v742
    %1006 = vmatpush2.bf16.msra.mxu0 %v741
    %1007 = vmatprep.subr.bf16.mxu0 %v734
    %1008 = vmatpush2.bf16.msra.mxu0 %v733
    %1009 = vmatprep.subr.bf16.mxu0 %v726
    %1010 = vmatpush2.bf16.msra.mxu0 %v725
    %1011 = vmatprep.subr.bf16.mxu0 %v718
    %1012 = vmatpush2.bf16.msra.mxu0 %v717
    %1013 = vmatprep.subr.bf16.mxu0 %v710
    %1014 = vmatpush2.bf16.msra.mxu0 %v709
    %1015 = vmatprep.mubr.bf16.mxu0 %v254
    %1016 = vmatmul.mubr.bf16.gmra.mxu0 %v253
    %v1017 = vpop.f32.mrf.mxu0
    %v1018 = vadd.f32 %v226, %v1017
    %v1019 = vpop.f32.mrf.mxu0
    %v1020 = vadd.f32 %v230, %v1019
    %v1021 = vpop.f32.mrf.mxu0
    %v1022 = vadd.f32 %v226, %v1021
    %v1023 = vpop.f32.mrf.mxu0
    %v1024 = vadd.f32 %v230, %v1023
    %1025 = vdwg.mxu0
    %1026 = vmatprep.subr.bf16.mxu0 %v704
    %1027 = vmatpush1.bf16.msra.mxu0 %v703
    %1028 = vmatprep.subr.bf16.mxu0 %v696
    %1029 = vmatpush1.bf16.msra.mxu0 %v695
    %1030 = vmatprep.subr.bf16.mxu0 %v688
    %1031 = vmatpush1.bf16.msra.mxu0 %v687
    %1032 = vmatprep.subr.bf16.mxu0 %v680
    %1033 = vmatpush1.bf16.msra.mxu0 %v679
    %1034 = vmatprep.subr.bf16.mxu0 %v672
    %1035 = vmatpush1.bf16.msra.mxu0 %v671
    %1036 = vmatprep.subr.bf16.mxu0 %v664
    %1037 = vmatpush1.bf16.msra.mxu0 %v663
    %1038 = vmatprep.subr.bf16.mxu0 %v656
    %1039 = vmatpush1.bf16.msra.mxu0 %v655
    %1040 = vmatprep.subr.bf16.mxu0 %v648
    %1041 = vmatpush1.bf16.msra.mxu0 %v647
    %1042 = vmatprep.subr.bf16.mxu0 %v768
    %1043 = vmatpush2.bf16.msra.mxu0 %v767
    %1044 = vmatprep.subr.bf16.mxu0 %v760
    %1045 = vmatpush2.bf16.msra.mxu0 %v759
    %1046 = vmatprep.subr.bf16.mxu0 %v752
    %1047 = vmatpush2.bf16.msra.mxu0 %v751
    %1048 = vmatprep.subr.bf16.mxu0 %v744
    %1049 = vmatpush2.bf16.msra.mxu0 %v743
    %1050 = vmatprep.subr.bf16.mxu0 %v736
    %1051 = vmatpush2.bf16.msra.mxu0 %v735
    %1052 = vmatprep.subr.bf16.mxu0 %v728
    %1053 = vmatpush2.bf16.msra.mxu0 %v727
    %1054 = vmatprep.subr.bf16.mxu0 %v720
    %1055 = vmatpush2.bf16.msra.mxu0 %v719
    %1056 = vmatprep.subr.bf16.mxu0 %v712
    %1057 = vmatpush2.bf16.msra.mxu0 %v711
    %1058 = vmatprep.mubr.bf16.mxu0 %v254
    %1059 = vmatmul.mubr.bf16.gmra.mxu0 %v253
    %v1060 = vpop.f32.mrf.mxu0
    %v1061 = vadd.f32 %v234, %v1060
    %v1062 = vpop.f32.mrf.mxu0
    %v1063 = vadd.f32 %v238, %v1062
    %v1064 = vpop.f32.mrf.mxu0
    %v1065 = vadd.f32 %v234, %v1064
    %v1066 = vpop.f32.mrf.mxu0
    %v1067 = vadd.f32 %v238, %v1066
    %1068 = vdwg.mxu0
    %v1069 = vmax.f32 %v932, 0.0
    %v1070 = vmax.f32 %v934, 0.0
    %v1071 = vmax.f32 %v975, 0.0
    %v1072 = vmax.f32 %v977, 0.0
    %v1073 = vmax.f32 %v1018, 0.0
    %v1074 = vmax.f32 %v1020, 0.0
    %v1075 = vmax.f32 %v1061, 0.0
    %v1076 = vmax.f32 %v1063, 0.0
    %v1077 = vmax.f32 %v936, 0.0
    %v1078 = vmax.f32 %v938, 0.0
    %v1079 = vmax.f32 %v979, 0.0
    %v1080 = vmax.f32 %v981, 0.0
    %v1081 = vmax.f32 %v1022, 0.0
    %v1082 = vmax.f32 %v1024, 0.0
    %v1083 = vmax.f32 %v1065, 0.0
    %v1084 = vmax.f32 %v1067, 0.0
    %v1085 = vpack.c.bf16 %v1077, %v1069
    %v1086 = vpack.c.bf16 %v1078, %v1070
    %v1087 = vpack.c.bf16 %v1079, %v1071
    %v1088 = vpack.c.bf16 %v1080, %v1072
    %v1089 = vpack.c.bf16 %v1081, %v1073
    %v1090 = vpack.c.bf16 %v1082, %v1074
    %v1091 = vpack.c.bf16 %v1083, %v1075
    %v1092 = vpack.c.bf16 %v1084, %v1076
    %v1093 = vld [vmem:[#allocation8] sm:$0xf]
    %v1094 = vld [vmem:[#allocation8 + $0x4] sm:$0xf]
    %v1095 = vld [vmem:[#allocation8 + $0x8] sm:$0xf]
    %v1096 = vld [vmem:[#allocation8 + $0xc] sm:$0xf]
    %v1097 = vld [vmem:[#allocation8 + $0x10] sm:$0xf]
    %v1098 = vld [vmem:[#allocation8 + $0x14] sm:$0xf]
    %v1099 = vld [vmem:[#allocation8 + $0x18] sm:$0xf]
    %v1100 = vld [vmem:[#allocation8 + $0x1c] sm:$0xf]
    %v1101 = vld [vmem:[#allocation8 + $0x20] sm:$0xf]
    %v1102 = vld [vmem:[#allocation8 + $0x24] sm:$0xf]
    %v1103 = vld [vmem:[#allocation8 + $0x28] sm:$0xf]
    %v1104 = vld [vmem:[#allocation8 + $0x2c] sm:$0xf]
    %v1105 = vld [vmem:[#allocation8 + $0x30] sm:$0xf]
    %v1106 = vld [vmem:[#allocation8 + $0x34] sm:$0xf]
    %v1107 = vld [vmem:[#allocation8 + $0x38] sm:$0xf]
    %v1108 = vld [vmem:[#allocation8 + $0x3c] sm:$0xf]
    %v1109 = vld [vmem:[#allocation8 + $0x40] sm:$0xf]
    %v1110 = vld [vmem:[#allocation8 + $0x44] sm:$0xf]
    %v1111 = vld [vmem:[#allocation8 + $0x48] sm:$0xf]
    %v1112 = vld [vmem:[#allocation8 + $0x4c] sm:$0xf]
    %v1113 = vld [vmem:[#allocation8 + $0x50] sm:$0xf]
    %v1114 = vld [vmem:[#allocation8 + $0x54] sm:$0xf]
    %v1115 = vld [vmem:[#allocation8 + $0x58] sm:$0xf]
    %v1116 = vld [vmem:[#allocation8 + $0x5c] sm:$0xf]
    %v1117 = vld [vmem:[#allocation8 + $0x60] sm:$0xf]
    %v1118 = vld [vmem:[#allocation8 + $0x64] sm:$0xf]
    %v1119 = vld [vmem:[#allocation8 + $0x68] sm:$0xf]
    %v1120 = vld [vmem:[#allocation8 + $0x6c] sm:$0xf]
    %v1121 = vld [vmem:[#allocation8 + $0x70] sm:$0xf]
    %v1122 = vld [vmem:[#allocation8 + $0x74] sm:$0xf]
    %v1123 = vld [vmem:[#allocation8 + $0x78] sm:$0xf]
    %v1124 = vld [vmem:[#allocation8 + $0x7c] sm:$0xf]
    %v1125 = vld [vmem:[#allocation8 + $0x80] sm:$0xf]
    %v1126 = vld [vmem:[#allocation8 + $0x84] sm:$0xf]
    %v1127 = vld [vmem:[#allocation8 + $0x88] sm:$0xf]
    %v1128 = vld [vmem:[#allocation8 + $0x8c] sm:$0xf]
    %v1129 = vld [vmem:[#allocation8 + $0x90] sm:$0xf]
    %v1130 = vld [vmem:[#allocation8 + $0x94] sm:$0xf]
    %v1131 = vld [vmem:[#allocation8 + $0x98] sm:$0xf]
    %v1132 = vld [vmem:[#allocation8 + $0x9c] sm:$0xf]
    %v1133 = vld [vmem:[#allocation8 + $0xa0] sm:$0xf]
    %v1134 = vld [vmem:[#allocation8 + $0xa4] sm:$0xf]
    %v1135 = vld [vmem:[#allocation8 + $0xa8] sm:$0xf]
    %v1136 = vld [vmem:[#allocation8 + $0xac] sm:$0xf]
    %v1137 = vld [vmem:[#allocation8 + $0xb0] sm:$0xf]
    %v1138 = vld [vmem:[#allocation8 + $0xb4] sm:$0xf]
    %v1139 = vld [vmem:[#allocation8 + $0xb8] sm:$0xf]
    %v1140 = vld [vmem:[#allocation8 + $0xbc] sm:$0xf]
    %v1141 = vld [vmem:[#allocation8 + $0xc0] sm:$0xf]
    %v1142 = vld [vmem:[#allocation8 + $0xc4] sm:$0xf]
    %v1143 = vld [vmem:[#allocation8 + $0xc8] sm:$0xf]
    %v1144 = vld [vmem:[#allocation8 + $0xcc] sm:$0xf]
    %v1145 = vld [vmem:[#allocation8 + $0xd0] sm:$0xf]
    %v1146 = vld [vmem:[#allocation8 + $0xd4] sm:$0xf]
    %v1147 = vld [vmem:[#allocation8 + $0xd8] sm:$0xf]
    %v1148 = vld [vmem:[#allocation8 + $0xdc] sm:$0xf]
    %v1149 = vld [vmem:[#allocation8 + $0xe0] sm:$0xf]
    %v1150 = vld [vmem:[#allocation8 + $0xe4] sm:$0xf]
    %v1151 = vld [vmem:[#allocation8 + $0xe8] sm:$0xf]
    %v1152 = vld [vmem:[#allocation8 + $0xec] sm:$0xf]
    %v1153 = vld [vmem:[#allocation8 + $0xf0] sm:$0xf]
    %v1154 = vld [vmem:[#allocation8 + $0xf4] sm:$0xf]
    %v1155 = vld [vmem:[#allocation8 + $0xf8] sm:$0xf]
    %v1156 = vld [vmem:[#allocation8 + $0xfc] sm:$0xf]
    %v1157 = vld [vmem:[#allocation8 + $0x100] sm:$0xf]
    %v1158 = vld [vmem:[#allocation8 + $0x104] sm:$0xf]
    %v1159 = vld [vmem:[#allocation8 + $0x108] sm:$0xf]
    %v1160 = vld [vmem:[#allocation8 + $0x10c] sm:$0xf]
    %v1161 = vld [vmem:[#allocation8 + $0x110] sm:$0xf]
    %v1162 = vld [vmem:[#allocation8 + $0x114] sm:$0xf]
    %v1163 = vld [vmem:[#allocation8 + $0x118] sm:$0xf]
    %v1164 = vld [vmem:[#allocation8 + $0x11c] sm:$0xf]
    %v1165 = vld [vmem:[#allocation8 + $0x120] sm:$0xf]
    %v1166 = vld [vmem:[#allocation8 + $0x124] sm:$0xf]
    %v1167 = vld [vmem:[#allocation8 + $0x128] sm:$0xf]
    %v1168 = vld [vmem:[#allocation8 + $0x12c] sm:$0xf]
    %v1169 = vld [vmem:[#allocation8 + $0x130] sm:$0xf]
    %v1170 = vld [vmem:[#allocation8 + $0x134] sm:$0xf]
    %v1171 = vld [vmem:[#allocation8 + $0x138] sm:$0xf]
    %v1172 = vld [vmem:[#allocation8 + $0x13c] sm:$0xf]
    %v1173 = vld [vmem:[#allocation8 + $0x140] sm:$0xf]
    %v1174 = vld [vmem:[#allocation8 + $0x144] sm:$0xf]
    %v1175 = vld [vmem:[#allocation8 + $0x148] sm:$0xf]
    %v1176 = vld [vmem:[#allocation8 + $0x14c] sm:$0xf]
    %v1177 = vld [vmem:[#allocation8 + $0x150] sm:$0xf]
    %v1178 = vld [vmem:[#allocation8 + $0x154] sm:$0xf]
    %v1179 = vld [vmem:[#allocation8 + $0x158] sm:$0xf]
    %v1180 = vld [vmem:[#allocation8 + $0x15c] sm:$0xf]
    %v1181 = vld [vmem:[#allocation8 + $0x160] sm:$0xf]
    %v1182 = vld [vmem:[#allocation8 + $0x164] sm:$0xf]
    %v1183 = vld [vmem:[#allocation8 + $0x168] sm:$0xf]
    %v1184 = vld [vmem:[#allocation8 + $0x16c] sm:$0xf]
    %v1185 = vld [vmem:[#allocation8 + $0x170] sm:$0xf]
    %v1186 = vld [vmem:[#allocation8 + $0x174] sm:$0xf]
    %v1187 = vld [vmem:[#allocation8 + $0x178] sm:$0xf]
    %v1188 = vld [vmem:[#allocation8 + $0x17c] sm:$0xf]
    %v1189 = vld [vmem:[#allocation8 + $0x180] sm:$0xf]
    %v1190 = vld [vmem:[#allocation8 + $0x184] sm:$0xf]
    %v1191 = vld [vmem:[#allocation8 + $0x188] sm:$0xf]
    %v1192 = vld [vmem:[#allocation8 + $0x18c] sm:$0xf]
    %v1193 = vld [vmem:[#allocation8 + $0x190] sm:$0xf]
    %v1194 = vld [vmem:[#allocation8 + $0x194] sm:$0xf]
    %v1195 = vld [vmem:[#allocation8 + $0x198] sm:$0xf]
    %v1196 = vld [vmem:[#allocation8 + $0x19c] sm:$0xf]
    %v1197 = vld [vmem:[#allocation8 + $0x1a0] sm:$0xf]
    %v1198 = vld [vmem:[#allocation8 + $0x1a4] sm:$0xf]
    %v1199 = vld [vmem:[#allocation8 + $0x1a8] sm:$0xf]
    %v1200 = vld [vmem:[#allocation8 + $0x1ac] sm:$0xf]
    %v1201 = vld [vmem:[#allocation8 + $0x1b0] sm:$0xf]
    %v1202 = vld [vmem:[#allocation8 + $0x1b4] sm:$0xf]
    %v1203 = vld [vmem:[#allocation8 + $0x1b8] sm:$0xf]
    %v1204 = vld [vmem:[#allocation8 + $0x1bc] sm:$0xf]
    %v1205 = vld [vmem:[#allocation8 + $0x1c0] sm:$0xf]
    %v1206 = vld [vmem:[#allocation8 + $0x1c4] sm:$0xf]
    %v1207 = vld [vmem:[#allocation8 + $0x1c8] sm:$0xf]
    %v1208 = vld [vmem:[#allocation8 + $0x1cc] sm:$0xf]
    %v1209 = vld [vmem:[#allocation8 + $0x1d0] sm:$0xf]
    %v1210 = vld [vmem:[#allocation8 + $0x1d4] sm:$0xf]
    %v1211 = vld [vmem:[#allocation8 + $0x1d8] sm:$0xf]
    %v1212 = vld [vmem:[#allocation8 + $0x1dc] sm:$0xf]
    %v1213 = vld [vmem:[#allocation8 + $0x1e0] sm:$0xf]
    %v1214 = vld [vmem:[#allocation8 + $0x1e4] sm:$0xf]
    %v1215 = vld [vmem:[#allocation8 + $0x1e8] sm:$0xf]
    %v1216 = vld [vmem:[#allocation8 + $0x1ec] sm:$0xf]
    %v1217 = vld [vmem:[#allocation8 + $0x1f0] sm:$0xf]
    %v1218 = vld [vmem:[#allocation8 + $0x1f4] sm:$0xf]
    %v1219 = vld [vmem:[#allocation8 + $0x1f8] sm:$0xf]
    %v1220 = vld [vmem:[#allocation8 + $0x1fc] sm:$0xf]
    %v1221 = vld [vmem:[%s4] sm:$0x1]
    %v1223 = vlaneseq
    %v1224 = vshrl.u32 %v1223, 7
    %v1225 = vsub.s32 0, %v1224
    %v1226 = vrot.slane %v1221, %v1225
    %v1356 = vunpack.c.l.b16 %v1093
    %v1357 = vunpack.c.l.b16 %v1094
    %v1358 = vunpack.c.l.b16 %v1095
    %v1359 = vunpack.c.l.b16 %v1096
    %v1360 = vunpack.c.l.b16 %v1097
    %v1361 = vunpack.c.l.b16 %v1098
    %v1362 = vunpack.c.l.b16 %v1099
    %v1363 = vunpack.c.l.b16 %v1100
    %v1364 = vunpack.c.l.b16 %v1101
    %v1365 = vunpack.c.l.b16 %v1102
    %v1366 = vunpack.c.l.b16 %v1103
    %v1367 = vunpack.c.l.b16 %v1104
    %v1368 = vunpack.c.l.b16 %v1105
    %v1369 = vunpack.c.l.b16 %v1106
    %v1370 = vunpack.c.l.b16 %v1107
    %v1371 = vunpack.c.l.b16 %v1108
    %v1372 = vunpack.c.l.b16 %v1109
    %v1373 = vunpack.c.l.b16 %v1110
    %v1374 = vunpack.c.l.b16 %v1111
    %v1375 = vunpack.c.l.b16 %v1112
    %v1376 = vunpack.c.l.b16 %v1113
    %v1377 = vunpack.c.l.b16 %v1114
    %v1378 = vunpack.c.l.b16 %v1115
    %v1379 = vunpack.c.l.b16 %v1116
    %v1380 = vunpack.c.l.b16 %v1117
    %v1381 = vunpack.c.l.b16 %v1118
    %v1382 = vunpack.c.l.b16 %v1119
    %v1383 = vunpack.c.l.b16 %v1120
    %v1384 = vunpack.c.l.b16 %v1121
    %v1385 = vunpack.c.l.b16 %v1122
    %v1386 = vunpack.c.l.b16 %v1123
    %v1387 = vunpack.c.l.b16 %v1124
    %v1388 = vunpack.c.l.b16 %v1125
    %v1389 = vunpack.c.l.b16 %v1126
    %v1390 = vunpack.c.l.b16 %v1127
    %v1391 = vunpack.c.l.b16 %v1128
    %v1392 = vunpack.c.l.b16 %v1129
    %v1393 = vunpack.c.l.b16 %v1130
    %v1394 = vunpack.c.l.b16 %v1131
    %v1395 = vunpack.c.l.b16 %v1132
    %v1396 = vunpack.c.l.b16 %v1133
    %v1397 = vunpack.c.l.b16 %v1134
    %v1398 = vunpack.c.l.b16 %v1135
    %v1399 = vunpack.c.l.b16 %v1136
    %v1400 = vunpack.c.l.b16 %v1137
    %v1401 = vunpack.c.l.b16 %v1138
    %v1402 = vunpack.c.l.b16 %v1139
    %v1403 = vunpack.c.l.b16 %v1140
    %v1404 = vunpack.c.l.b16 %v1141
    %v1405 = vunpack.c.l.b16 %v1142
    %v1406 = vunpack.c.l.b16 %v1143
    %v1407 = vunpack.c.l.b16 %v1144
    %v1408 = vunpack.c.l.b16 %v1145
    %v1409 = vunpack.c.l.b16 %v1146
    %v1410 = vunpack.c.l.b16 %v1147
    %v1411 = vunpack.c.l.b16 %v1148
    %v1412 = vunpack.c.l.b16 %v1149
    %v1413 = vunpack.c.l.b16 %v1150
    %v1414 = vunpack.c.l.b16 %v1151
    %v1415 = vunpack.c.l.b16 %v1152
    %v1416 = vunpack.c.l.b16 %v1153
    %v1417 = vunpack.c.l.b16 %v1154
    %v1418 = vunpack.c.l.b16 %v1155
    %v1419 = vunpack.c.l.b16 %v1156
    %v1420 = vunpack.c.l.b16 %v1157
    %v1421 = vunpack.c.l.b16 %v1158
    %v1422 = vunpack.c.l.b16 %v1159
    %v1423 = vunpack.c.l.b16 %v1160
    %v1424 = vunpack.c.l.b16 %v1161
    %v1425 = vunpack.c.l.b16 %v1162
    %v1426 = vunpack.c.l.b16 %v1163
    %v1427 = vunpack.c.l.b16 %v1164
    %v1428 = vunpack.c.l.b16 %v1165
    %v1429 = vunpack.c.l.b16 %v1166
    %v1430 = vunpack.c.l.b16 %v1167
    %v1431 = vunpack.c.l.b16 %v1168
    %v1432 = vunpack.c.l.b16 %v1169
    %v1433 = vunpack.c.l.b16 %v1170
    %v1434 = vunpack.c.l.b16 %v1171
    %v1435 = vunpack.c.l.b16 %v1172
    %v1436 = vunpack.c.l.b16 %v1173
    %v1437 = vunpack.c.l.b16 %v1174
    %v1438 = vunpack.c.l.b16 %v1175
    %v1439 = vunpack.c.l.b16 %v1176
    %v1440 = vunpack.c.l.b16 %v1177
    %v1441 = vunpack.c.l.b16 %v1178
    %v1442 = vunpack.c.l.b16 %v1179
    %v1443 = vunpack.c.l.b16 %v1180
    %v1444 = vunpack.c.l.b16 %v1181
    %v1445 = vunpack.c.l.b16 %v1182
    %v1446 = vunpack.c.l.b16 %v1183
    %v1447 = vunpack.c.l.b16 %v1184
    %v1448 = vunpack.c.l.b16 %v1185
    %v1449 = vunpack.c.l.b16 %v1186
    %v1450 = vunpack.c.l.b16 %v1187
    %v1451 = vunpack.c.l.b16 %v1188
    %v1452 = vunpack.c.l.b16 %v1189
    %v1453 = vunpack.c.l.b16 %v1190
    %v1454 = vunpack.c.l.b16 %v1191
    %v1455 = vunpack.c.l.b16 %v1192
    %v1456 = vunpack.c.l.b16 %v1193
    %v1457 = vunpack.c.l.b16 %v1194
    %v1458 = vunpack.c.l.b16 %v1195
    %v1459 = vunpack.c.l.b16 %v1196
    %v1460 = vunpack.c.l.b16 %v1197
    %v1461 = vunpack.c.l.b16 %v1198
    %v1462 = vunpack.c.l.b16 %v1199
    %v1463 = vunpack.c.l.b16 %v1200
    %v1464 = vunpack.c.l.b16 %v1201
    %v1465 = vunpack.c.l.b16 %v1202
    %v1466 = vunpack.c.l.b16 %v1203
    %v1467 = vunpack.c.l.b16 %v1204
    %v1468 = vunpack.c.l.b16 %v1205
    %v1469 = vunpack.c.l.b16 %v1206
    %v1470 = vunpack.c.l.b16 %v1207
    %v1471 = vunpack.c.l.b16 %v1208
    %v1472 = vunpack.c.l.b16 %v1209
    %v1473 = vunpack.c.l.b16 %v1210
    %v1474 = vunpack.c.l.b16 %v1211
    %v1475 = vunpack.c.l.b16 %v1212
    %v1476 = vunpack.c.l.b16 %v1213
    %v1477 = vunpack.c.l.b16 %v1214
    %v1478 = vunpack.c.l.b16 %v1215
    %v1479 = vunpack.c.l.b16 %v1216
    %v1480 = vunpack.c.l.b16 %v1217
    %v1481 = vunpack.c.l.b16 %v1218
    %v1482 = vunpack.c.l.b16 %v1219
    %v1483 = vunpack.c.l.b16 %v1220
    %v1484 = vpack.c.b16 %v1357, %v1356
    %v1485 = vpack.c.b16 %v1359, %v1358
    %v1486 = vpack.c.b16 %v1361, %v1360
    %v1487 = vpack.c.b16 %v1363, %v1362
    %v1488 = vpack.c.b16 %v1365, %v1364
    %v1489 = vpack.c.b16 %v1367, %v1366
    %v1490 = vpack.c.b16 %v1369, %v1368
    %v1491 = vpack.c.b16 %v1371, %v1370
    %v1492 = vpack.c.b16 %v1373, %v1372
    %v1493 = vpack.c.b16 %v1375, %v1374
    %v1494 = vpack.c.b16 %v1377, %v1376
    %v1495 = vpack.c.b16 %v1379, %v1378
    %v1496 = vpack.c.b16 %v1381, %v1380
    %v1497 = vpack.c.b16 %v1383, %v1382
    %v1498 = vpack.c.b16 %v1385, %v1384
    %v1499 = vpack.c.b16 %v1387, %v1386
    %v1500 = vpack.c.b16 %v1389, %v1388
    %v1501 = vpack.c.b16 %v1391, %v1390
    %v1502 = vpack.c.b16 %v1393, %v1392
    %v1503 = vpack.c.b16 %v1395, %v1394
    %v1504 = vpack.c.b16 %v1397, %v1396
    %v1505 = vpack.c.b16 %v1399, %v1398
    %v1506 = vpack.c.b16 %v1401, %v1400
    %v1507 = vpack.c.b16 %v1403, %v1402
    %v1508 = vpack.c.b16 %v1405, %v1404
    %v1509 = vpack.c.b16 %v1407, %v1406
    %v1510 = vpack.c.b16 %v1409, %v1408
    %v1511 = vpack.c.b16 %v1411, %v1410
    %v1512 = vpack.c.b16 %v1413, %v1412
    %v1513 = vpack.c.b16 %v1415, %v1414
    %v1514 = vpack.c.b16 %v1417, %v1416
    %v1515 = vpack.c.b16 %v1419, %v1418
    %v1516 = vpack.c.b16 %v1421, %v1420
    %v1517 = vpack.c.b16 %v1423, %v1422
    %v1518 = vpack.c.b16 %v1425, %v1424
    %v1519 = vpack.c.b16 %v1427, %v1426
    %v1520 = vpack.c.b16 %v1429, %v1428
    %v1521 = vpack.c.b16 %v1431, %v1430
    %v1522 = vpack.c.b16 %v1433, %v1432
    %v1523 = vpack.c.b16 %v1435, %v1434
    %v1524 = vpack.c.b16 %v1437, %v1436
    %v1525 = vpack.c.b16 %v1439, %v1438
    %v1526 = vpack.c.b16 %v1441, %v1440
    %v1527 = vpack.c.b16 %v1443, %v1442
    %v1528 = vpack.c.b16 %v1445, %v1444
    %v1529 = vpack.c.b16 %v1447, %v1446
    %v1530 = vpack.c.b16 %v1449, %v1448
    %v1531 = vpack.c.b16 %v1451, %v1450
    %v1532 = vpack.c.b16 %v1453, %v1452
    %v1533 = vpack.c.b16 %v1455, %v1454
    %v1534 = vpack.c.b16 %v1457, %v1456
    %v1535 = vpack.c.b16 %v1459, %v1458
    %v1536 = vpack.c.b16 %v1461, %v1460
    %v1537 = vpack.c.b16 %v1463, %v1462
    %v1538 = vpack.c.b16 %v1465, %v1464
    %v1539 = vpack.c.b16 %v1467, %v1466
    %v1540 = vpack.c.b16 %v1469, %v1468
    %v1541 = vpack.c.b16 %v1471, %v1470
    %v1542 = vpack.c.b16 %v1473, %v1472
    %v1543 = vpack.c.b16 %v1475, %v1474
    %v1544 = vpack.c.b16 %v1477, %v1476
    %v1545 = vpack.c.b16 %v1479, %v1478
    %v1546 = vpack.c.b16 %v1481, %v1480
    %v1547 = vpack.c.b16 %v1483, %v1482
    %1612 = vmatprep.subr.bf16.mxu0 0
    %1613 = vmatpush1.bf16.msra.mxu0 %v1491
    %1614 = vmatprep.subr.bf16.mxu0 0
    %1615 = vmatpush1.bf16.msra.mxu0 %v1490
    %1616 = vmatprep.subr.bf16.mxu0 0
    %1617 = vmatpush1.bf16.msra.mxu0 %v1489
    %1618 = vmatprep.subr.bf16.mxu0 0
    %1619 = vmatpush1.bf16.msra.mxu0 %v1488
    %1620 = vmatprep.subr.bf16.mxu0 0
    %1621 = vmatpush1.bf16.msra.mxu0 %v1487
    %1622 = vmatprep.subr.bf16.mxu0 0
    %1623 = vmatpush1.bf16.msra.mxu0 %v1486
    %1624 = vmatprep.subr.bf16.mxu0 0
    %1625 = vmatpush1.bf16.msra.mxu0 %v1485
    %1626 = vmatprep.subr.bf16.mxu0 0
    %1627 = vmatpush1.bf16.msra.mxu0 %v1484
    %1628 = vmatprep.subr.bf16.mxu0 0
    %1629 = vmatpush2.bf16.msra.mxu0 %v1499
    %1630 = vmatprep.subr.bf16.mxu0 0
    %1631 = vmatpush2.bf16.msra.mxu0 %v1498
    %1632 = vmatprep.subr.bf16.mxu0 0
    %1633 = vmatpush2.bf16.msra.mxu0 %v1497
    %1634 = vmatprep.subr.bf16.mxu0 0
    %1635 = vmatpush2.bf16.msra.mxu0 %v1496
    %1636 = vmatprep.subr.bf16.mxu0 0
    %1637 = vmatpush2.bf16.msra.mxu0 %v1495
    %1638 = vmatprep.subr.bf16.mxu0 0
    %1639 = vmatpush2.bf16.msra.mxu0 %v1494
    %1640 = vmatprep.subr.bf16.mxu0 0
    %1641 = vmatpush2.bf16.msra.mxu0 %v1493
    %1642 = vmatprep.subr.bf16.mxu0 0
    %1643 = vmatpush2.bf16.msra.mxu0 %v1492
    %1644 = vmatprep.mubr.bf16.mxu0 %v1086
    %1645 = vmatmul.mubr.bf16.gmra.mxu0 %v1085
    %v1646 = vpop.f32.mrf.mxu0
    %v1647 = vadd.f32 %v1226, %v1646
    %v1648 = vpop.f32.mrf.mxu0
    %v1649 = vpop.f32.mrf.mxu0
    %v1650 = vadd.f32 %v1226, %v1649
    %v1651 = vpop.f32.mrf.mxu0
    %1652 = vdwg.mxu0
    %1653 = vmatprep.subr.bf16.mxu0 0
    %1654 = vmatpush1.bf16.msra.mxu0 %v1507
    %1655 = vmatprep.subr.bf16.mxu0 0
    %1656 = vmatpush1.bf16.msra.mxu0 %v1506
    %1657 = vmatprep.subr.bf16.mxu0 0
    %1658 = vmatpush1.bf16.msra.mxu0 %v1505
    %1659 = vmatprep.subr.bf16.mxu0 0
    %1660 = vmatpush1.bf16.msra.mxu0 %v1504
    %1661 = vmatprep.subr.bf16.mxu0 0
    %1662 = vmatpush1.bf16.msra.mxu0 %v1503
    %1663 = vmatprep.subr.bf16.mxu0 0
    %1664 = vmatpush1.bf16.msra.mxu0 %v1502
    %1665 = vmatprep.subr.bf16.mxu0 0
    %1666 = vmatpush1.bf16.msra.mxu0 %v1501
    %1667 = vmatprep.subr.bf16.mxu0 0
    %1668 = vmatpush1.bf16.msra.mxu0 %v1500
    %1669 = vmatprep.subr.bf16.mxu0 0
    %1670 = vmatpush2.bf16.msra.mxu0 %v1515
    %1671 = vmatprep.subr.bf16.mxu0 0
    %1672 = vmatpush2.bf16.msra.mxu0 %v1514
    %1673 = vmatprep.subr.bf16.mxu0 0
    %1674 = vmatpush2.bf16.msra.mxu0 %v1513
    %1675 = vmatprep.subr.bf16.mxu0 0
    %1676 = vmatpush2.bf16.msra.mxu0 %v1512
    %1677 = vmatprep.subr.bf16.mxu0 0
    %1678 = vmatpush2.bf16.msra.mxu0 %v1511
    %1679 = vmatprep.subr.bf16.mxu0 0
    %1680 = vmatpush2.bf16.msra.mxu0 %v1510
    %1681 = vmatprep.subr.bf16.mxu0 0
    %1682 = vmatpush2.bf16.msra.mxu0 %v1509
    %1683 = vmatprep.subr.bf16.mxu0 0
    %1684 = vmatpush2.bf16.msra.mxu0 %v1508
    %1685 = vmatprep.mubr.bf16.mxu0 %v1088
    %1686 = vmatmul.mubr.bf16.gmra.mxu0 %v1087
    %v1687 = vpop.f32.mrf.mxu0
    %v1688 = vadd.f32 %v1647, %v1687
    %v1689 = vpop.f32.mrf.mxu0
    %v1690 = vpop.f32.mrf.mxu0
    %v1691 = vadd.f32 %v1650, %v1690
    %v1692 = vpop.f32.mrf.mxu0
    %1693 = vdwg.mxu0
    %1694 = vmatprep.subr.bf16.mxu0 0
    %1695 = vmatpush1.bf16.msra.mxu0 %v1523
    %1696 = vmatprep.subr.bf16.mxu0 0
    %1697 = vmatpush1.bf16.msra.mxu0 %v1522
    %1698 = vmatprep.subr.bf16.mxu0 0
    %1699 = vmatpush1.bf16.msra.mxu0 %v1521
    %1700 = vmatprep.subr.bf16.mxu0 0
    %1701 = vmatpush1.bf16.msra.mxu0 %v1520
    %1702 = vmatprep.subr.bf16.mxu0 0
    %1703 = vmatpush1.bf16.msra.mxu0 %v1519
    %1704 = vmatprep.subr.bf16.mxu0 0
    %1705 = vmatpush1.bf16.msra.mxu0 %v1518
    %1706 = vmatprep.subr.bf16.mxu0 0
    %1707 = vmatpush1.bf16.msra.mxu0 %v1517
    %1708 = vmatprep.subr.bf16.mxu0 0
    %1709 = vmatpush1.bf16.msra.mxu0 %v1516
    %1710 = vmatprep.subr.bf16.mxu0 0
    %1711 = vmatpush2.bf16.msra.mxu0 %v1531
    %1712 = vmatprep.subr.bf16.mxu0 0
    %1713 = vmatpush2.bf16.msra.mxu0 %v1530
    %1714 = vmatprep.subr.bf16.mxu0 0
    %1715 = vmatpush2.bf16.msra.mxu0 %v1529
    %1716 = vmatprep.subr.bf16.mxu0 0
    %1717 = vmatpush2.bf16.msra.mxu0 %v1528
    %1718 = vmatprep.subr.bf16.mxu0 0
    %1719 = vmatpush2.bf16.msra.mxu0 %v1527
    %1720 = vmatprep.subr.bf16.mxu0 0
    %1721 = vmatpush2.bf16.msra.mxu0 %v1526
    %1722 = vmatprep.subr.bf16.mxu0 0
    %1723 = vmatpush2.bf16.msra.mxu0 %v1525
    %1724 = vmatprep.subr.bf16.mxu0 0
    %1725 = vmatpush2.bf16.msra.mxu0 %v1524
    %1726 = vmatprep.mubr.bf16.mxu0 %v1090
    %1727 = vmatmul.mubr.bf16.gmra.mxu0 %v1089
    %v1728 = vpop.f32.mrf.mxu0
    %v1729 = vadd.f32 %v1688, %v1728
    %v1730 = vpop.f32.mrf.mxu0
    %v1731 = vpop.f32.mrf.mxu0
    %v1732 = vadd.f32 %v1691, %v1731
    %v1733 = vpop.f32.mrf.mxu0
    %1734 = vdwg.mxu0
    %1735 = vmatprep.subr.bf16.mxu0 0
    %1736 = vmatpush1.bf16.msra.mxu0 %v1539
    %1737 = vmatprep.subr.bf16.mxu0 0
    %1738 = vmatpush1.bf16.msra.mxu0 %v1538
    %1739 = vmatprep.subr.bf16.mxu0 0
    %1740 = vmatpush1.bf16.msra.mxu0 %v1537
    %1741 = vmatprep.subr.bf16.mxu0 0
    %1742 = vmatpush1.bf16.msra.mxu0 %v1536
    %1743 = vmatprep.subr.bf16.mxu0 0
    %1744 = vmatpush1.bf16.msra.mxu0 %v1535
    %1745 = vmatprep.subr.bf16.mxu0 0
    %1746 = vmatpush1.bf16.msra.mxu0 %v1534
    %1747 = vmatprep.subr.bf16.mxu0 0
    %1748 = vmatpush1.bf16.msra.mxu0 %v1533
    %1749 = vmatprep.subr.bf16.mxu0 0
    %1750 = vmatpush1.bf16.msra.mxu0 %v1532
    %1751 = vmatprep.subr.bf16.mxu0 0
    %1752 = vmatpush2.bf16.msra.mxu0 %v1547
    %1753 = vmatprep.subr.bf16.mxu0 0
    %1754 = vmatpush2.bf16.msra.mxu0 %v1546
    %1755 = vmatprep.subr.bf16.mxu0 0
    %1756 = vmatpush2.bf16.msra.mxu0 %v1545
    %1757 = vmatprep.subr.bf16.mxu0 0
    %1758 = vmatpush2.bf16.msra.mxu0 %v1544
    %1759 = vmatprep.subr.bf16.mxu0 0
    %1760 = vmatpush2.bf16.msra.mxu0 %v1543
    %1761 = vmatprep.subr.bf16.mxu0 0
    %1762 = vmatpush2.bf16.msra.mxu0 %v1542
    %1763 = vmatprep.subr.bf16.mxu0 0
    %1764 = vmatpush2.bf16.msra.mxu0 %v1541
    %1765 = vmatprep.subr.bf16.mxu0 0
    %1766 = vmatpush2.bf16.msra.mxu0 %v1540
    %1767 = vmatprep.mubr.bf16.mxu0 %v1092
    %1768 = vmatmul.mubr.bf16.gmra.mxu0 %v1091
    %v1769 = vpop.f32.mrf.mxu0
    %v1770 = vadd.f32 %v1729, %v1769
    %v1771 = vpop.f32.mrf.mxu0
    %v1772 = vpop.f32.mrf.mxu0
    %v1773 = vadd.f32 %v1732, %v1772
    %v1774 = vpop.f32.mrf.mxu0
    %1775 = vdwg.mxu0
    %1776 = vst [vmem:[#allocation10] sm:$0xff] %v1770
    %1777 = vst [vmem:[#allocation10 + $0x8] sm:$0xff] %v1773
    // Predicated region
    $region38: #{tpu_custom_call.1} parent=1 // pred_check
      _
    $region39: #{tpu_custom_call.1} parent=1 // pred_check_branch
      %1779 = sbr.rel (0) target = $region41
    $region40: #{tpu_custom_call.1} parent=1 // pred_region
      %s1781 = ssub.s32 256, 256
      %1782 = vsyncadd [#allocation4], %s1781
      %s1783 = sshll.u32 [#allocation10], 4
      %s1784 = int_to_ptr.vmem [resolvable:$true] %s1783
      %1789 = dma.vmem_to_hbm [thread:$0]  %s1784, 256, %s5, [#allocation4], 128, 128, 8
    $region41: #{tpu_custom_call.1} parent=1 // pred_fallthru
      _
    // Predicated region
    $region42: #{tpu_custom_call.1} parent=1 // pred_check
      _
    $region43: #{tpu_custom_call.1} parent=1 // pred_check_branch
      %1791 = sbr.rel (0) target = $region45
    $region44: #{tpu_custom_call.1} parent=1 // pred_region
      %1792 = dma.done [#allocation4], 256
    $region45: #{tpu_custom_call.1} parent=1 // pred_fallthru
      _
    %1793 = vsyncpa [#allocation3], 1
    %1794 = vsyncpa [#allocation6], 1
    %1795 = vsyncpa [#allocation9], 1
    %1796 = vsyncpa [#allocation4], 1

</llo_original>
